<compile_context>
chip_gen: v7x
topology: tpu7x:2x2x1
jax: 0.10.0
libtpu: 0.0.40
codegen_flags: <defaults>
</compile_context>

<pallas_src>
import math

import jax
import jax.numpy as jnp
from jax import lax
from jax.experimental import pallas as pl
from jax.experimental.pallas import tpu as pltpu

NUM_GROUPS = 32
EPS = 1e-6


def _flash_spatial_attn_kernel(
    x_q_ref,            # (1, Tq, C) f32   raw input, query block (also residual)
    x_kv_ref,           # (1, Tk, C) f32   raw input, kv block
    scale_ref,          # (1, 1, C) f32    folded GroupNorm scale  (gamma * inv_std)
    shift_ref,          # (1, 1, C) f32    folded GroupNorm shift  (beta - mean*gamma*inv_std)
    wq_ref, bq_ref,     # (C, C) bf16, (1, C) f32   (already scaled by C**-0.5)
    wk_ref, bk_ref,
    wv_ref, bv_ref,
    wp_ref, bp_ref,
    o_ref,              # (1, Tq, C) f32
    q_s,                # (Tq, C) bf16 scratch
    acc_s,              # (Tq, C) f32 scratch
    m_s,                # (Tq, 1) f32 scratch
    l_s,                # (Tq, 1) f32 scratch
):
    ki = pl.program_id(2)
    nk = pl.num_programs(2)

    # ---- per-(batch, q-block) init: q projection + online-softmax state ----
    @pl.when(ki == 0)
    def _init():
        h_q = x_q_ref[0] * scale_ref[0] + shift_ref[0]               # (Tq, C) f32
        q = jnp.dot(h_q.astype(jnp.bfloat16), wq_ref[...],
                    preferred_element_type=jnp.float32) + bq_ref[...]
        q_s[...] = q.astype(jnp.bfloat16)
        m_s[...] = jnp.full(m_s.shape, -jnp.inf, dtype=jnp.float32)
        l_s[...] = jnp.zeros(l_s.shape, dtype=jnp.float32)
        acc_s[...] = jnp.zeros(acc_s.shape, dtype=jnp.float32)

    # ---- kv block: normalize, project to k/v, online softmax update ----
    h_kv = (x_kv_ref[0] * scale_ref[0] + shift_ref[0]).astype(jnp.bfloat16)  # (Tk, C)
    k = (jnp.dot(h_kv, wk_ref[...], preferred_element_type=jnp.float32)
         + bk_ref[...]).astype(jnp.bfloat16)
    v = (jnp.dot(h_kv, wv_ref[...], preferred_element_type=jnp.float32)
         + bv_ref[...]).astype(jnp.bfloat16)

    # scores (Tq, Tk): contract over C (NT form, transpose handled by MXU)
    s = lax.dot_general(q_s[...], k,
                        dimension_numbers=(((1,), (1,)), ((), ())),
                        preferred_element_type=jnp.float32)

    m_prev = m_s[...]
    m_new = jnp.maximum(m_prev, jnp.max(s, axis=-1, keepdims=True))
    alpha = jnp.exp(m_prev - m_new)
    p = jnp.exp(s - m_new)                                           # (Tq, Tk) f32
    l_s[...] = alpha * l_s[...] + jnp.sum(p, axis=-1, keepdims=True)
    acc_s[...] = alpha * acc_s[...] + jnp.dot(
        p.astype(jnp.bfloat16), v, preferred_element_type=jnp.float32)
    m_s[...] = m_new

    # ---- finalize: softmax normalization, proj_out, residual ----
    @pl.when(ki == nk - 1)
    def _finalize():
        out = acc_s[...] * pl.reciprocal(l_s[...], approx=True)      # (Tq, C) f32
        proj = jnp.dot(out.astype(jnp.bfloat16), wp_ref[...],
                       preferred_element_type=jnp.float32) + bp_ref[...]
        o_ref[0] = x_q_ref[0] + proj


def spatial_self_attention(x_nchw, params, *, block_q=128, block_k=128):
    """x_nchw: (B, C, H, W) float32. Returns (B, C, H, W)."""
    B, C, H, W = x_nchw.shape
    N = H * W
    G = NUM_GROUPS
    assert C % G == 0, "GroupNorm(32) requires channels divisible by 32"

    x_f32 = x_nchw.astype(jnp.float32)

    # ---- GroupNorm stats hoisted out of the kernel (two-pass, f32) ----
    xg = x_f32.reshape(B, G, (C // G) * N)
    mean_g = jnp.mean(xg, axis=-1)                                   # (B, G)
    var_g = jnp.mean((xg - mean_g[..., None]) ** 2, axis=-1)         # (B, G)
    inv_std_g = lax.rsqrt(var_g + EPS)
    mean_c = jnp.repeat(mean_g, C // G, axis=1)                      # (B, C)
    inv_std_c = jnp.repeat(inv_std_g, C // G, axis=1)                # (B, C)
    gamma = params["norm_w"].astype(jnp.float32)[None, :]
    beta = params["norm_b"].astype(jnp.float32)[None, :]
    scale_c = (gamma * inv_std_c).reshape(B, 1, C)
    shift_c = (beta - mean_c * gamma * inv_std_c).reshape(B, 1, C)

    # ---- layout: NCHW -> (B, N, C) channels-last for the kernel ----
    x = jnp.transpose(x_f32, (0, 2, 3, 1)).reshape(B, N, C)

    # ---- weights: Conv2d (Cout, Cin, 1, 1) -> (Cin, Cout) bf16, biases (1, C) f32.
    #      1/sqrt(C) folded into Wq and bq (moves the scale off the N^2 path). ----
    attn_scale = float(C) ** (-0.5)

    def wmat(w, scl=1.0):
        return (jnp.transpose(w[:, :, 0, 0], (1, 0)).astype(jnp.float32)
                * scl).astype(jnp.bfloat16)

    def brow(b, scl=1.0):
        return (b.astype(jnp.float32) * scl).reshape(1, C)

    wq, bq = wmat(params["q_w"], attn_scale), brow(params["q_b"], attn_scale)
    wk, bk = wmat(params["k_w"]), brow(params["k_b"])
    wv, bv = wmat(params["v_w"]), brow(params["v_b"])
    wp, bp = wmat(params["proj_w"]), brow(params["proj_b"])

    # ---- tiling ----
    tq = block_q if (N % block_q == 0) else N
    tk = block_k if (N % block_k == 0) else N
    n_q, n_k = N // tq, N // tk
    grid = (B, n_q, n_k)

    x_q_spec = pl.BlockSpec((1, tq, C), lambda b, qi, ki: (b, qi, 0))
    x_kv_spec = pl.BlockSpec((1, tk, C), lambda b, qi, ki: (b, ki, 0))
    vec_spec = pl.BlockSpec((1, 1, C), lambda b, qi, ki: (b, 0, 0))
    w_spec = pl.BlockSpec((C, C), lambda b, qi, ki: (0, 0))
    b_spec = pl.BlockSpec((1, C), lambda b, qi, ki: (0, 0))

    scratch_shapes = [
        pltpu.VMEM((tq, C), jnp.bfloat16),   # q block
        pltpu.VMEM((tq, C), jnp.float32),    # accumulator
        pltpu.VMEM((tq, 1), jnp.float32),    # running max
        pltpu.VMEM((tq, 1), jnp.float32),    # running sum
    ]

    # ---- explicit VMEM budget (inputs/outputs double-buffered by the pipeline) ----
    act_vmem = 2 * 4 * (tq * C + tk * C + tq * C)          # x_q, x_kv, out
    vec_vmem = 2 * 4 * (2 * C + 4 * C)                     # scale, shift, 4 biases
    w_vmem = 2 * 2 * 4 * C * C                             # 4 bf16 weights
    scr_vmem = 2 * tq * C + 4 * tq * C + 2 * 4 * tq
    vmem_limit = min(max(2 * (act_vmem + vec_vmem + w_vmem + scr_vmem), 32 << 20),
                     64 << 20)

    cost = pl.CostEstimate(
        flops=int(B * (8 * N * C * C + 4 * N * N * C)),
        transcendentals=int(B * N * N),
        bytes_accessed=int(3 * B * N * C * 4 + 4 * C * C * 2),
    )

    fn = pl.pallas_call(
        _flash_spatial_attn_kernel,
        out_shape=jax.ShapeDtypeStruct((B, N, C), jnp.float32),
        grid=grid,
        in_specs=[
            x_q_spec, x_kv_spec,
            vec_spec, vec_spec,
            w_spec, b_spec,      # q
            w_spec, b_spec,      # k
            w_spec, b_spec,      # v
            w_spec, b_spec,      # proj_out
        ],
        out_specs=x_q_spec,
        scratch_shapes=scratch_shapes,
        compiler_params=pltpu.CompilerParams(
            dimension_semantics=("parallel", "parallel", "arbitrary"),
            vmem_limit_bytes=int(vmem_limit)),
        cost_estimate=cost,
    )

    out = fn(x, x, scale_c, shift_c, wq, bq, wk, bk, wv, bv, wp, bp)
    # (B, N, C) -> NCHW
    return jnp.transpose(out.reshape(B, H, W, C), (0, 3, 1, 2))


def _reference(x_nchw, params):
    """Pure-JAX f32 reference mirroring the PyTorch forward."""
    B, C, H, W = x_nchw.shape
    G = NUM_GROUPS
    x = x_nchw.astype(jnp.float32)
    xg = x.reshape(B, G, C // G, H, W)
    mean = jnp.mean(xg, axis=(2, 3, 4), keepdims=True)
    var = jnp.mean((xg - mean) ** 2, axis=(2, 3, 4), keepdims=True)
    hn = ((xg - mean) / jnp.sqrt(var + EPS)).reshape(B, C, H, W)
    hn = hn * params["norm_w"][None, :, None, None] + params["norm_b"][None, :, None, None]

    def conv1x1(h, w, b):
        return jnp.einsum("bchw,oc->bohw", h, w[:, :, 0, 0]) + b[None, :, None, None]

    q = conv1x1(hn, params["q_w"], params["q_b"])
    k = conv1x1(hn, params["k_w"], params["k_b"])
    v = conv1x1(hn, params["v_w"], params["v_b"])
    q = q.reshape(B, C, H * W).transpose(0, 2, 1)
    k = k.reshape(B, C, H * W)
    w_ = jnp.einsum("bij,bjk->bik", q, k) * (C ** -0.5)
    w_ = jax.nn.softmax(w_, axis=2)
    v = v.reshape(B, C, H * W)
    h_ = jnp.einsum("bij,bjk->bik", v, w_.transpose(0, 2, 1))
    h_ = h_.reshape(B, C, H, W)
    h_ = conv1x1(h_, params["proj_w"], params["proj_b"])
    return x + h_


def _init_params(key, C):
    ks = jax.random.split(key, 9)

    def conv(k):
        bound = 1.0 / math.sqrt(C)
        return jax.random.uniform(k, (C, C, 1, 1), jnp.float32, -bound, bound)

    return {
        "norm_w": jnp.ones((C,), jnp.float32),
        "norm_b": jnp.zeros((C,), jnp.float32),
        "q_w": conv(ks[0]), "q_b": jax.random.uniform(ks[1], (C,), jnp.float32, -0.1, 0.1),
        "k_w": conv(ks[2]), "k_b": jax.random.uniform(ks[3], (C,), jnp.float32, -0.1, 0.1),
        "v_w": conv(ks[4]), "v_b": jax.random.uniform(ks[5], (C,), jnp.float32, -0.1, 0.1),
        "proj_w": conv(ks[6]), "proj_b": jax.random.uniform(ks[7], (C,), jnp.float32, -0.1, 0.1),
    }


if __name__ == "__main__":
    key = jax.random.PRNGKey(0)
    k_x, k_p = jax.random.split(key)
    # GroupNorm(32) needs C % 32 == 0; N=256 exercises both q and kv tiling (2x2 blocks).
    B, C, H, W = 2, 64, 16, 16
    x = jax.random.normal(k_x, (B, C, H, W), jnp.float32)
    params = _init_params(k_p, C)

    out = jax.block_until_ready(spatial_self_attention(x, params))
    ref = _reference(x, params)

    assert out.shape == (B, C, H, W)
    err = float(jnp.max(jnp.abs(out - ref)))
    # bf16 MXU operands vs f32 reference -> looser tolerance than the f32-only version.
    assert err < 5e-2, err
    print("KERNEL_OK")
</pallas_src>

<mosaic_0001>
module attributes {stable_mosaic.version = 11 : i64} {
  func.func @_flash_spatial_attn_kernel(%arg0: i32, %arg1: i32, %arg2: i32, %arg3: memref<1x128x64xf32, #tpu.memory_space<vmem>>, %arg4: memref<1x128x64xf32, #tpu.memory_space<vmem>>, %arg5: memref<1x1x64xf32, #tpu.memory_space<vmem>>, %arg6: memref<1x1x64xf32, #tpu.memory_space<vmem>>, %arg7: memref<64x64xbf16, #tpu.memory_space<vmem>>, %arg8: memref<1x64xf32, #tpu.memory_space<vmem>>, %arg9: memref<64x64xbf16, #tpu.memory_space<vmem>>, %arg10: memref<1x64xf32, #tpu.memory_space<vmem>>, %arg11: memref<64x64xbf16, #tpu.memory_space<vmem>>, %arg12: memref<1x64xf32, #tpu.memory_space<vmem>>, %arg13: memref<64x64xbf16, #tpu.memory_space<vmem>>, %arg14: memref<1x64xf32, #tpu.memory_space<vmem>>, %arg15: memref<1x128x64xf32, #tpu.memory_space<vmem>>, %arg16: memref<128x64xbf16, #tpu.memory_space<vmem>>, %arg17: memref<128x64xf32, #tpu.memory_space<vmem>>, %arg18: memref<128x1xf32, #tpu.memory_space<vmem>>, %arg19: memref<128x1xf32, #tpu.memory_space<vmem>>) attributes {dimension_semantics = [#tpu.dimension_semantics<parallel>, #tpu.dimension_semantics<parallel>, #tpu.dimension_semantics<arbitrary>], iteration_bounds = array<i64: 2, 2, 2>, scalar_prefetch = 0 : i64, scratch_operands = 4 : i64, tpu.core_type = #tpu.core_type<tc>, window_params = [{transform_indices = @transform_0, window_bounds = array<i64: 1, 128, 64>}, {transform_indices = @transform_1, window_bounds = array<i64: 1, 128, 64>}, {transform_indices = @transform_2, window_bounds = array<i64: 1, 1, 64>}, {transform_indices = @transform_3, window_bounds = array<i64: 1, 1, 64>}, {pipeline_mode = #tpu.pipeline_mode<synchronous>, transform_indices = @transform_4, window_bounds = array<i64: 64, 64>}, {pipeline_mode = #tpu.pipeline_mode<synchronous>, transform_indices = @transform_5, window_bounds = array<i64: 1, 64>}, {pipeline_mode = #tpu.pipeline_mode<synchronous>, transform_indices = @transform_6, window_bounds = array<i64: 64, 64>}, {pipeline_mode = #tpu.pipeline_mode<synchronous>, transform_indices = @transform_7, window_bounds = array<i64: 1, 64>}, {pipeline_mode = #tpu.pipeline_mode<synchronous>, transform_indices = @transform_8, window_bounds = array<i64: 64, 64>}, {pipeline_mode = #tpu.pipeline_mode<synchronous>, transform_indices = @transform_9, window_bounds = array<i64: 1, 64>}, {pipeline_mode = #tpu.pipeline_mode<synchronous>, transform_indices = @transform_10, window_bounds = array<i64: 64, 64>}, {pipeline_mode = #tpu.pipeline_mode<synchronous>, transform_indices = @transform_11, window_bounds = array<i64: 1, 64>}, {transform_indices = @transform_12, window_bounds = array<i64: 1, 128, 64>}]} {
    %c0_i32 = arith.constant 0 : i32
    %0 = arith.cmpi eq, %arg2, %c0_i32 : i32
    %1 = arith.extui %0 : i1 to i32
    %c0_i32_0 = arith.constant 0 : i32
    %2 = arith.cmpi ne, %1, %c0_i32_0 : i32
    scf.if %2 {
      %c0_37 = arith.constant 0 : index
      %c0_38 = arith.constant 0 : index
      %c0_39 = arith.constant 0 : index
      %54 = vector.load %arg3[%c0_37, %c0_38, %c0_39] : memref<1x128x64xf32, #tpu.memory_space<vmem>>, vector<1x128x64xf32>
      %55 = vector.shape_cast %54 : vector<1x128x64xf32> to vector<128x64xf32>
      %c0_40 = arith.constant 0 : index
      %c0_41 = arith.constant 0 : index
      %c0_42 = arith.constant 0 : index
      %56 = vector.load %arg5[%c0_40, %c0_41, %c0_42] : memref<1x1x64xf32, #tpu.memory_space<vmem>>, vector<1x1x64xf32>
      %57 = vector.shape_cast %56 : vector<1x1x64xf32> to vector<1x64xf32>
      %58 = vector.broadcast %57 : vector<1x64xf32> to vector<128x64xf32>
      %59 = arith.mulf %55, %58 : vector<128x64xf32>
      %c0_43 = arith.constant 0 : index
      %c0_44 = arith.constant 0 : index
      %c0_45 = arith.constant 0 : index
      %60 = vector.load %arg6[%c0_43, %c0_44, %c0_45] : memref<1x1x64xf32, #tpu.memory_space<vmem>>, vector<1x1x64xf32>
      %61 = vector.shape_cast %60 : vector<1x1x64xf32> to vector<1x64xf32>
      %62 = vector.broadcast %61 : vector<1x64xf32> to vector<128x64xf32>
      %63 = arith.addf %59, %62 : vector<128x64xf32>
      %64 = arith.truncf %63 : vector<128x64xf32> to vector<128x64xbf16>
      %c0_46 = arith.constant 0 : index
      %c0_47 = arith.constant 0 : index
      %65 = vector.load %arg7[%c0_46, %c0_47] : memref<64x64xbf16, #tpu.memory_space<vmem>>, vector<64x64xbf16>
      %cst_48 = arith.constant dense<0.000000e+00> : vector<128x64xf32>
      %66 = tpu.matmul %64, %65, %cst_48 {dimension_numbers = #tpu.dot_dimension_numbers<[1], [0], [0], [1], [0, 0, 1, 1], [], []>} : vector<128x64xbf16>, vector<64x64xbf16>, vector<128x64xf32> -> vector<128x64xf32>
      %c0_49 = arith.constant 0 : index
      %c0_50 = arith.constant 0 : index
      %67 = vector.load %arg8[%c0_49, %c0_50] : memref<1x64xf32, #tpu.memory_space<vmem>>, vector<1x64xf32>
      %68 = vector.broadcast %67 : vector<1x64xf32> to vector<128x64xf32>
      %69 = arith.addf %66, %68 : vector<128x64xf32>
      %70 = arith.truncf %69 : vector<128x64xf32> to vector<128x64xbf16>
      %c0_51 = arith.constant 0 : index
      %c0_52 = arith.constant 0 : index
      %71 = vector.load %arg16[%c0_51, %c0_52] : memref<128x64xbf16, #tpu.memory_space<vmem>>, vector<128x64xbf16>
      tpu.vector_store %arg16[%c0_51, %c0_52], %70 {strides = array<i32>} : memref<128x64xbf16, #tpu.memory_space<vmem>>, vector<128x64xbf16>,
      %cst_53 = arith.constant 0xFF800000 : f32
      %72 = vector.broadcast %cst_53 : f32 to vector<128x1xf32>
      %c0_54 = arith.constant 0 : index
      %c0_55 = arith.constant 0 : index
      %73 = vector.load %arg18[%c0_54, %c0_55] : memref<128x1xf32, #tpu.memory_space<vmem>>, vector<128x1xf32>
      tpu.vector_store %arg18[%c0_54, %c0_55], %72 {strides = array<i32>} : memref<128x1xf32, #tpu.memory_space<vmem>>, vector<128x1xf32>,
      %cst_56 = arith.constant 0.000000e+00 : f32
      %74 = vector.broadcast %cst_56 : f32 to vector<128x1xf32>
      %c0_57 = arith.constant 0 : index
      %c0_58 = arith.constant 0 : index
      %75 = vector.load %arg19[%c0_57, %c0_58] : memref<128x1xf32, #tpu.memory_space<vmem>>, vector<128x1xf32>
      tpu.vector_store %arg19[%c0_57, %c0_58], %74 {strides = array<i32>} : memref<128x1xf32, #tpu.memory_space<vmem>>, vector<128x1xf32>,
      %cst_59 = arith.constant 0.000000e+00 : f32
      %76 = vector.broadcast %cst_59 : f32 to vector<128x64xf32>
      %c0_60 = arith.constant 0 : index
      %c0_61 = arith.constant 0 : index
      %77 = vector.load %arg17[%c0_60, %c0_61] : memref<128x64xf32, #tpu.memory_space<vmem>>, vector<128x64xf32>
      tpu.vector_store %arg17[%c0_60, %c0_61], %76 {strides = array<i32>} : memref<128x64xf32, #tpu.memory_space<vmem>>, vector<128x64xf32>,
    } else {
    }
    %c0 = arith.constant 0 : index
    %c0_1 = arith.constant 0 : index
    %c0_2 = arith.constant 0 : index
    %3 = vector.load %arg4[%c0, %c0_1, %c0_2] : memref<1x128x64xf32, #tpu.memory_space<vmem>>, vector<1x128x64xf32>
    %4 = vector.shape_cast %3 : vector<1x128x64xf32> to vector<128x64xf32>
    %c0_3 = arith.constant 0 : index
    %c0_4 = arith.constant 0 : index
    %c0_5 = arith.constant 0 : index
    %5 = vector.load %arg5[%c0_3, %c0_4, %c0_5] : memref<1x1x64xf32, #tpu.memory_space<vmem>>, vector<1x1x64xf32>
    %6 = vector.shape_cast %5 : vector<1x1x64xf32> to vector<1x64xf32>
    %7 = vector.broadcast %6 : vector<1x64xf32> to vector<128x64xf32>
    %8 = arith.mulf %4, %7 : vector<128x64xf32>
    %c0_6 = arith.constant 0 : index
    %c0_7 = arith.constant 0 : index
    %c0_8 = arith.constant 0 : index
    %9 = vector.load %arg6[%c0_6, %c0_7, %c0_8] : memref<1x1x64xf32, #tpu.memory_space<vmem>>, vector<1x1x64xf32>
    %10 = vector.shape_cast %9 : vector<1x1x64xf32> to vector<1x64xf32>
    %11 = vector.broadcast %10 : vector<1x64xf32> to vector<128x64xf32>
    %12 = arith.addf %8, %11 : vector<128x64xf32>
    %13 = arith.truncf %12 : vector<128x64xf32> to vector<128x64xbf16>
    %c0_9 = arith.constant 0 : index
    %c0_10 = arith.constant 0 : index
    %14 = vector.load %arg9[%c0_9, %c0_10] : memref<64x64xbf16, #tpu.memory_space<vmem>>, vector<64x64xbf16>
    %cst = arith.constant dense<0.000000e+00> : vector<128x64xf32>
    %15 = tpu.matmul %13, %14, %cst {dimension_numbers = #tpu.dot_dimension_numbers<[1], [0], [0], [1], [0, 0, 1, 1], [], []>} : vector<128x64xbf16>, vector<64x64xbf16>, vector<128x64xf32> -> vector<128x64xf32>
    %c0_11 = arith.constant 0 : index
    %c0_12 = arith.constant 0 : index
    %16 = vector.load %arg10[%c0_11, %c0_12] : memref<1x64xf32, #tpu.memory_space<vmem>>, vector<1x64xf32>
    %17 = vector.broadcast %16 : vector<1x64xf32> to vector<128x64xf32>
    %18 = arith.addf %15, %17 : vector<128x64xf32>
    %19 = arith.truncf %18 : vector<128x64xf32> to vector<128x64xbf16>
    %c0_13 = arith.constant 0 : index
    %c0_14 = arith.constant 0 : index
    %20 = vector.load %arg11[%c0_13, %c0_14] : memref<64x64xbf16, #tpu.memory_space<vmem>>, vector<64x64xbf16>
    %cst_15 = arith.constant dense<0.000000e+00> : vector<128x64xf32>
    %21 = tpu.matmul %13, %20, %cst_15 {dimension_numbers = #tpu.dot_dimension_numbers<[1], [0], [0], [1], [0, 0, 1, 1], [], []>} : vector<128x64xbf16>, vector<64x64xbf16>, vector<128x64xf32> -> vector<128x64xf32>
    %c0_16 = arith.constant 0 : index
    %c0_17 = arith.constant 0 : index
    %22 = vector.load %arg12[%c0_16, %c0_17] : memref<1x64xf32, #tpu.memory_space<vmem>>, vector<1x64xf32>
    %23 = vector.broadcast %22 : vector<1x64xf32> to vector<128x64xf32>
    %24 = arith.addf %21, %23 : vector<128x64xf32>
    %25 = arith.truncf %24 : vector<128x64xf32> to vector<128x64xbf16>
    %c0_18 = arith.constant 0 : index
    %c0_19 = arith.constant 0 : index
    %26 = vector.load %arg16[%c0_18, %c0_19] : memref<128x64xbf16, #tpu.memory_space<vmem>>, vector<128x64xbf16>
    %cst_20 = arith.constant dense<0.000000e+00> : vector<128x128xf32>
    %27 = tpu.matmul %26, %19, %cst_20 {dimension_numbers = #tpu.dot_dimension_numbers<[1], [1], [0], [0], [0, 0, 1, 0], [], []>} : vector<128x64xbf16>, vector<128x64xbf16>, vector<128x128xf32> -> vector<128x128xf32>
    %c0_21 = arith.constant 0 : index
    %c0_22 = arith.constant 0 : index
    %28 = vector.load %arg18[%c0_21, %c0_22] : memref<128x1xf32, #tpu.memory_space<vmem>>, vector<128x1xf32>
    %cst_23 = arith.constant dense<0xFF800000> : vector<128xf32>
    %29 = vector.multi_reduction <maximumf>, %27, %cst_23 [1] : vector<128x128xf32> to vector<128xf32>
    %30 = vector.shape_cast %29 : vector<128xf32> to vector<128x1xf32>
    %31 = arith.maximumf %28, %30 : vector<128x1xf32>
    %32 = arith.subf %28, %31 : vector<128x1xf32>
    %33 = math.exp %32 : vector<128x1xf32>
    %34 = vector.broadcast %31 : vector<128x1xf32> to vector<128x128xf32>
    %35 = arith.subf %27, %34 : vector<128x128xf32>
    %36 = math.exp %35 : vector<128x128xf32>
    %c0_24 = arith.constant 0 : index
    %c0_25 = arith.constant 0 : index
    %37 = vector.load %arg19[%c0_24, %c0_25] : memref<128x1xf32, #tpu.memory_space<vmem>>, vector<128x1xf32>
    %38 = arith.mulf %33, %37 : vector<128x1xf32>
    %cst_26 = arith.constant dense<0.000000e+00> : vector<128xf32>
    %39 = vector.multi_reduction <add>, %36, %cst_26 [1] : vector<128x128xf32> to vector<128xf32>
    %40 = vector.shape_cast %39 : vector<128xf32> to vector<128x1xf32>
    %41 = arith.addf %38, %40 : vector<128x1xf32>
    %c0_27 = arith.constant 0 : index
    %c0_28 = arith.constant 0 : index
    %42 = vector.load %arg19[%c0_27, %c0_28] : memref<128x1xf32, #tpu.memory_space<vmem>>, vector<128x1xf32>
    tpu.vector_store %arg19[%c0_27, %c0_28], %41 {strides = array<i32>} : memref<128x1xf32, #tpu.memory_space<vmem>>, vector<128x1xf32>,
    %c0_29 = arith.constant 0 : index
    %c0_30 = arith.constant 0 : index
    %43 = vector.load %arg17[%c0_29, %c0_30] : memref<128x64xf32, #tpu.memory_space<vmem>>, vector<128x64xf32>
    %44 = vector.broadcast %33 : vector<128x1xf32> to vector<128x64xf32>
    %45 = arith.mulf %44, %43 : vector<128x64xf32>
    %46 = arith.truncf %36 : vector<128x128xf32> to vector<128x128xbf16>
    %cst_31 = arith.constant dense<0.000000e+00> : vector<128x64xf32>
    %47 = tpu.matmul %46, %25, %cst_31 {dimension_numbers = #tpu.dot_dimension_numbers<[1], [0], [0], [1], [0, 0, 1, 1], [], []>} : vector<128x128xbf16>, vector<128x64xbf16>, vector<128x64xf32> -> vector<128x64xf32>
    %48 = arith.addf %45, %47 : vector<128x64xf32>
    %c0_32 = arith.constant 0 : index
    %c0_33 = arith.constant 0 : index
    %49 = vector.load %arg17[%c0_32, %c0_33] : memref<128x64xf32, #tpu.memory_space<vmem>>, vector<128x64xf32>
    tpu.vector_store %arg17[%c0_32, %c0_33], %48 {strides = array<i32>} : memref<128x64xf32, #tpu.memory_space<vmem>>, vector<128x64xf32>,
    %c0_34 = arith.constant 0 : index
    %c0_35 = arith.constant 0 : index
    %50 = vector.load %arg18[%c0_34, %c0_35] : memref<128x1xf32, #tpu.memory_space<vmem>>, vector<128x1xf32>
    tpu.vector_store %arg18[%c0_34, %c0_35], %31 {strides = array<i32>} : memref<128x1xf32, #tpu.memory_space<vmem>>, vector<128x1xf32>,
    %c1_i32 = arith.constant 1 : i32
    %51 = arith.cmpi eq, %arg2, %c1_i32 : i32
    %52 = arith.extui %51 : i1 to i32
    %c0_i32_36 = arith.constant 0 : i32
    %53 = arith.cmpi ne, %52, %c0_i32_36 : i32
    scf.if %53 {
      %c0_37 = arith.constant 0 : index
      %c0_38 = arith.constant 0 : index
      %54 = vector.load %arg17[%c0_37, %c0_38] : memref<128x64xf32, #tpu.memory_space<vmem>>, vector<128x64xf32>
      %c0_39 = arith.constant 0 : index
      %c0_40 = arith.constant 0 : index
      %55 = vector.load %arg19[%c0_39, %c0_40] : memref<128x1xf32, #tpu.memory_space<vmem>>, vector<128x1xf32>
      %56 = tpu.reciprocal %55 {approx = true} : vector<128x1xf32> -> vector<128x1xf32>
      %57 = vector.broadcast %56 : vector<128x1xf32> to vector<128x64xf32>
      %58 = arith.mulf %54, %57 : vector<128x64xf32>
      %59 = arith.truncf %58 : vector<128x64xf32> to vector<128x64xbf16>
      %c0_41 = arith.constant 0 : index
      %c0_42 = arith.constant 0 : index
      %60 = vector.load %arg13[%c0_41, %c0_42] : memref<64x64xbf16, #tpu.memory_space<vmem>>, vector<64x64xbf16>
      %cst_43 = arith.constant dense<0.000000e+00> : vector<128x64xf32>
      %61 = tpu.matmul %59, %60, %cst_43 {dimension_numbers = #tpu.dot_dimension_numbers<[1], [0], [0], [1], [0, 0, 1, 1], [], []>} : vector<128x64xbf16>, vector<64x64xbf16>, vector<128x64xf32> -> vector<128x64xf32>
      %c0_44 = arith.constant 0 : index
      %c0_45 = arith.constant 0 : index
      %62 = vector.load %arg14[%c0_44, %c0_45] : memref<1x64xf32, #tpu.memory_space<vmem>>, vector<1x64xf32>
      %63 = vector.broadcast %62 : vector<1x64xf32> to vector<128x64xf32>
      %64 = arith.addf %61, %63 : vector<128x64xf32>
      %c0_46 = arith.constant 0 : index
      %c0_47 = arith.constant 0 : index
      %c0_48 = arith.constant 0 : index
      %65 = vector.load %arg3[%c0_46, %c0_47, %c0_48] : memref<1x128x64xf32, #tpu.memory_space<vmem>>, vector<1x128x64xf32>
      %66 = vector.shape_cast %65 : vector<1x128x64xf32> to vector<128x64xf32>
      %67 = arith.addf %66, %64 : vector<128x64xf32>
      %c0_49 = arith.constant 0 : index
      %c0_50 = arith.constant 0 : index
      %c0_51 = arith.constant 0 : index
      %68 = vector.load %arg15[%c0_49, %c0_50, %c0_51] : memref<1x128x64xf32, #tpu.memory_space<vmem>>, vector<1x128x64xf32>
      %69 = vector.shape_cast %68 : vector<1x128x64xf32> to vector<128x64xf32>
      %70 = vector.shape_cast %67 : vector<128x64xf32> to vector<1x128x64xf32>
      tpu.vector_store %arg15[%c0_49, %c0_50, %c0_51], %70 {strides = array<i32>} : memref<1x128x64xf32, #tpu.memory_space<vmem>>, vector<1x128x64xf32>,
    } else {
    }
    return
  }
  func.func @transform_0(%arg0: i32, %arg1: i32, %arg2: i32) -> (i32, i32, i32) {
    %c0_i32 = arith.constant 0 : i32
    %c0_i32_0 = arith.constant 0 : i32
    return %arg0, %arg1, %c0_i32 : i32, i32, i32
  }
  func.func @transform_1(%arg0: i32, %arg1: i32, %arg2: i32) -> (i32, i32, i32) {
    %c0_i32 = arith.constant 0 : i32
    %c0_i32_0 = arith.constant 0 : i32
    return %arg0, %arg2, %c0_i32 : i32, i32, i32
  }
  func.func @transform_2(%arg0: i32, %arg1: i32, %arg2: i32) -> (i32, i32, i32) {
    %c0_i32 = arith.constant 0 : i32
    %c0_i32_0 = arith.constant 0 : i32
    %c0_i32_1 = arith.constant 0 : i32
    return %arg0, %c0_i32, %c0_i32_0 : i32, i32, i32
  }
  func.func @transform_3(%arg0: i32, %arg1: i32, %arg2: i32) -> (i32, i32, i32) {
    %c0_i32 = arith.constant 0 : i32
    %c0_i32_0 = arith.constant 0 : i32
    %c0_i32_1 = arith.constant 0 : i32
    return %arg0, %c0_i32, %c0_i32_0 : i32, i32, i32
  }
  func.func @transform_4(%arg0: i32, %arg1: i32, %arg2: i32) -> (i32, i32) {
    %c0_i32 = arith.constant 0 : i32
    %c0_i32_0 = arith.constant 0 : i32
    %c0_i32_1 = arith.constant 0 : i32
    return %c0_i32, %c0_i32_0 : i32, i32
  }
  func.func @transform_5(%arg0: i32, %arg1: i32, %arg2: i32) -> (i32, i32) {
    %c0_i32 = arith.constant 0 : i32
    %c0_i32_0 = arith.constant 0 : i32
    %c0_i32_1 = arith.constant 0 : i32
    return %c0_i32, %c0_i32_0 : i32, i32
  }
  func.func @transform_6(%arg0: i32, %arg1: i32, %arg2: i32) -> (i32, i32) {
    %c0_i32 = arith.constant 0 : i32
    %c0_i32_0 = arith.constant 0 : i32
    %c0_i32_1 = arith.constant 0 : i32
    return %c0_i32, %c0_i32_0 : i32, i32
  }
  func.func @transform_7(%arg0: i32, %arg1: i32, %arg2: i32) -> (i32, i32) {
    %c0_i32 = arith.constant 0 : i32
    %c0_i32_0 = arith.constant 0 : i32
    %c0_i32_1 = arith.constant 0 : i32
    return %c0_i32, %c0_i32_0 : i32, i32
  }
  func.func @transform_8(%arg0: i32, %arg1: i32, %arg2: i32) -> (i32, i32) {
    %c0_i32 = arith.constant 0 : i32
    %c0_i32_0 = arith.constant 0 : i32
    %c0_i32_1 = arith.constant 0 : i32
    return %c0_i32, %c0_i32_0 : i32, i32
  }
  func.func @transform_9(%arg0: i32, %arg1: i32, %arg2: i32) -> (i32, i32) {
    %c0_i32 = arith.constant 0 : i32
    %c0_i32_0 = arith.constant 0 : i32
    %c0_i32_1 = arith.constant 0 : i32
    return %c0_i32, %c0_i32_0 : i32, i32
  }
  func.func @transform_10(%arg0: i32, %arg1: i32, %arg2: i32) -> (i32, i32) {
    %c0_i32 = arith.constant 0 : i32
    %c0_i32_0 = arith.constant 0 : i32
    %c0_i32_1 = arith.constant 0 : i32
    return %c0_i32, %c0_i32_0 : i32, i32
  }
  func.func @transform_11(%arg0: i32, %arg1: i32, %arg2: i32) -> (i32, i32) {
    %c0_i32 = arith.constant 0 : i32
    %c0_i32_0 = arith.constant 0 : i32
    %c0_i32_1 = arith.constant 0 : i32
    return %c0_i32, %c0_i32_0 : i32, i32
  }
  func.func @transform_12(%arg0: i32, %arg1: i32, %arg2: i32) -> (i32, i32, i32) {
    %c0_i32 = arith.constant 0 : i32
    %c0_i32_0 = arith.constant 0 : i32
    return %arg0, %arg1, %c0_i32 : i32, i32, i32
  }
}

</mosaic_0001>

<llo_original>
// kernel: tpu_custom_call.1
$region0: #{tpu_custom_call.1}
  #allocation0 [shape = 'u32[]', space=smem, size = 0x4, offset = 0x4, fixed_abs, tag = 'smem constant byte address 0x4 - core index']
  #allocation1 [shape = 'u32[144,128]{1,0:T(1,128)}', space=vmem, size = 0x12000, scoped, tag = 'internal scratch']
  #allocation2 [shape = 'bf16[128,64]{1,0:T(16,128)(2,1)}', space=vmem, size = 0x8000, scoped, tag = 'scratch operand']
  #allocation3 [shape = 'f32[128,64]{1,0:T(8,128)}', space=vmem, size = 0x10000, scoped, tag = 'scratch operand']
  #allocation4 [shape = 'f32[128,1]{1,0:T(8,128)}', space=vmem, size = 0x10000, scoped, tag = 'scratch operand']
  #allocation5 [shape = 'f32[128,1]{1,0:T(8,128)}', space=vmem, size = 0x10000, scoped, tag = 'scratch operand']
  %s0 = inlined_call_operand.vmem [shape: f32[2,256,64], index: 0, kind: input, shape index: {}]
  %s1 = inlined_call_operand.vmem [shape: f32[2,256,64], index: 1, kind: input, shape index: {}]
  %s2 = inlined_call_operand.vmem [shape: f32[2,1,64], index: 2, kind: input, shape index: {}]
  %s3 = inlined_call_operand.vmem [shape: f32[2,1,64], index: 3, kind: input, shape index: {}]
  %s4 = inlined_call_operand.vmem [shape: bf16[64,64], index: 4, kind: input, shape index: {}]
  %s5 = inlined_call_operand.vmem [shape: f32[1,64], index: 5, kind: input, shape index: {}]
  %s6 = inlined_call_operand.vmem [shape: bf16[64,64], index: 6, kind: input, shape index: {}]
  %s7 = inlined_call_operand.vmem [shape: f32[1,64], index: 7, kind: input, shape index: {}]
  %s8 = inlined_call_operand.vmem [shape: bf16[64,64], index: 8, kind: input, shape index: {}]
  %s9 = inlined_call_operand.vmem [shape: f32[1,64], index: 9, kind: input, shape index: {}]
  %s10 = inlined_call_operand.vmem [shape: bf16[64,64], index: 10, kind: input, shape index: {}]
  %s11 = inlined_call_operand.vmem [shape: f32[1,64], index: 11, kind: input, shape index: {}]
  %s12 = inlined_call_operand.vmem [shape: f32[2,256,64], index: 12, kind: output, shape index: {}]
  %s13 = sld [smem:[#allocation0]]
  $region89: #{tpu_custom_call.1} parent=0
    _
  %s15 = ssub.s32 1, %s13
  %s16 = scalar_select 0, %s15, %s13
  loop: start=0, step=1, limit=10
  $region2: #{tpu_custom_call.1} parent=0 // loop_pre_header
    _
  $region3: #{tpu_custom_call.1} parent=0 // loop_header
    %s18 = sphi 0, %s22
    %p19 = scmp.ge.s32.totalorder %s18, 10
    %s25 = sphi 0, %s44
    %s26 = sphi 0, %s40
    %s27 = sphi 0, %s36
    %s28 = sphi 0, %s25
    %s29 = sphi 0, %s26
    %s30 = sphi 0, %s27
    %s31 = sphi 0, %s28
    %s32 = sphi 0, %s29
    %s33 = sphi 0, %s30
    %s49 = sphi 0, %s51
    %s52 = sphi 0, %s49
    %s53 = sphi 0, %s52
    %s69 = sphi 0, %s53
    %s77 = sphi 0, %s79
    %s80 = sphi 0, %s77
    %s81 = sphi 0, %s80
    %s97 = sphi 0, %s81
    %s103 = sphi 0, %s105
    %s106 = sphi 0, %s103
    %s107 = sphi 0, %s106
    %s123 = sphi 0, %s107
    %s129 = sphi 0, %s131
    %s132 = sphi 0, %s129
    %s133 = sphi 0, %s132
    %s149 = sphi 0, %s133
    %s153 = sphi 0, %s153
    %s155 = sphi 0, %s153
    %s156 = sphi 0, %s155
    %s170 = sphi 0, %s156
    %s174 = sphi 0, %s174
    %s176 = sphi 0, %s174
    %s177 = sphi 0, %s176
    %s191 = sphi 0, %s177
    %s195 = sphi 0, %s195
    %s197 = sphi 0, %s195
    %s198 = sphi 0, %s197
    %s212 = sphi 0, %s198
    %s216 = sphi 0, %s216
    %s218 = sphi 0, %s216
    %s219 = sphi 0, %s218
    %s233 = sphi 0, %s219
    %s237 = sphi 0, %s237
    %s239 = sphi 0, %s237
    %s240 = sphi 0, %s239
    %s254 = sphi 0, %s240
    %s258 = sphi 0, %s258
    %s260 = sphi 0, %s258
    %s261 = sphi 0, %s260
    %s275 = sphi 0, %s261
    %s279 = sphi 0, %s279
    %s281 = sphi 0, %s279
    %s282 = sphi 0, %s281
    %s296 = sphi 0, %s282
    %s300 = sphi 0, %s300
    %s302 = sphi 0, %s300
    %s303 = sphi 0, %s302
    %s317 = sphi 0, %s303
    %s325 = sphi 0, %s327
    %s328 = sphi 0, %s325
    %s329 = sphi 0, %s328
    %s345 = sphi 0, %s329
  $region4: #{tpu_custom_call.1} parent=0 // loop_header_branch
    %21 = sbr.rel (%p19) target = $region8
  $region5: #{tpu_custom_call.1} parent=0 // loop_body
    %s23 = ssub.s32 %s18, 1
    %s24 = ssub.s32 %s18, 2
    %s34 = sadd.s32 1, %s27
    %p35 = scmp.ge.s32.totalorder %s34, 2
    %s36 = scalar_select %p35, 0, %s34
    %s37 = sadd.s32 1, %s26
    %s38 = scalar_select %p35, %s37, %s26
    %p39 = scmp.ge.s32.totalorder %s38, 2
    %s40 = scalar_select %p39, 0, %s38
    %s41 = sadd.s32 1, %s25
    %s42 = scalar_select %p39, %s41, %s25
    %p43 = scmp.ge.s32.totalorder %s42, 2
    %s44 = scalar_select %p43, 0, %s42
    %s45 = ssub.s32 %s25, %s44
    %s46 = ssub.s32 %s26, %s40
    %s47 = sor.u32 %s45, %s46
    %p48 = scmp.eq.s32.totalorder %s47, 0
    %s50 = sadd.s32 %s49, 1
    %s51 = scalar_select %p48, %s49, %s50
    %p54 = pneg %p48
    %p55 = scmp.eq.s32.totalorder %s18, 7
    %p56 = por %p54, %p55
    %p57 = scmp.ne.s32.totalorder %s49, %s52
    %p58 = scmp.eq.s32.totalorder %s18, 0
    %p59 = por %p57, %p58
    %p60 = scmp.ne.s32.totalorder %s49, %s52
    %p61 = scmp.eq.s32.totalorder %s23, 7
    %p62 = por %p60, %p61
    %p63 = scmp.ne.s32.totalorder %s52, %s53
    %p64 = scmp.eq.s32.totalorder %s23, 0
    %p65 = por %p63, %p64
    %p66 = scmp.ne.s32.totalorder %s52, %s53
    %p67 = scmp.eq.s32.totalorder %s24, 7
    %p68 = por %p66, %p67
    %p70 = scmp.ne.s32.totalorder %s53, %s69
    %p71 = scmp.eq.s32.totalorder %s24, 0
    %p72 = por %p70, %p71
    %s73 = ssub.s32 %s25, %s44
    %s74 = ssub.s32 %s27, %s36
    %s75 = sor.u32 %s73, %s74
    %p76 = scmp.eq.s32.totalorder %s75, 0
    %s78 = sadd.s32 %s77, 1
    %s79 = scalar_select %p76, %s77, %s78
    %p82 = pneg %p76
    %p83 = scmp.eq.s32.totalorder %s18, 7
    %p84 = por %p82, %p83
    %p85 = scmp.ne.s32.totalorder %s77, %s80
    %p86 = scmp.eq.s32.totalorder %s18, 0
    %p87 = por %p85, %p86
    %p88 = scmp.ne.s32.totalorder %s77, %s80
    %p89 = scmp.eq.s32.totalorder %s23, 7
    %p90 = por %p88, %p89
    %p91 = scmp.ne.s32.totalorder %s80, %s81
    %p92 = scmp.eq.s32.totalorder %s23, 0
    %p93 = por %p91, %p92
    %p94 = scmp.ne.s32.totalorder %s80, %s81
    %p95 = scmp.eq.s32.totalorder %s24, 7
    %p96 = por %p94, %p95
    %p98 = scmp.ne.s32.totalorder %s81, %s97
    %p99 = scmp.eq.s32.totalorder %s24, 0
    %p100 = por %p98, %p99
    %s101 = ssub.s32 %s25, %s44
    %p102 = scmp.eq.s32.totalorder %s101, 0
    %s104 = sadd.s32 %s103, 1
    %s105 = scalar_select %p102, %s103, %s104
    %p108 = pneg %p102
    %p109 = scmp.eq.s32.totalorder %s18, 7
    %p110 = por %p108, %p109
    %p111 = scmp.ne.s32.totalorder %s103, %s106
    %p112 = scmp.eq.s32.totalorder %s18, 0
    %p113 = por %p111, %p112
    %p114 = scmp.ne.s32.totalorder %s103, %s106
    %p115 = scmp.eq.s32.totalorder %s23, 7
    %p116 = por %p114, %p115
    %p117 = scmp.ne.s32.totalorder %s106, %s107
    %p118 = scmp.eq.s32.totalorder %s23, 0
    %p119 = por %p117, %p118
    %p120 = scmp.ne.s32.totalorder %s106, %s107
    %p121 = scmp.eq.s32.totalorder %s24, 7
    %p122 = por %p120, %p121
    %p124 = scmp.ne.s32.totalorder %s107, %s123
    %p125 = scmp.eq.s32.totalorder %s24, 0
    %p126 = por %p124, %p125
    %s127 = ssub.s32 %s25, %s44
    %p128 = scmp.eq.s32.totalorder %s127, 0
    %s130 = sadd.s32 %s129, 1
    %s131 = scalar_select %p128, %s129, %s130
    %p134 = pneg %p128
    %p135 = scmp.eq.s32.totalorder %s18, 7
    %p136 = por %p134, %p135
    %p137 = scmp.ne.s32.totalorder %s129, %s132
    %p138 = scmp.eq.s32.totalorder %s18, 0
    %p139 = por %p137, %p138
    %p140 = scmp.ne.s32.totalorder %s129, %s132
    %p141 = scmp.eq.s32.totalorder %s23, 7
    %p142 = por %p140, %p141
    %p143 = scmp.ne.s32.totalorder %s132, %s133
    %p144 = scmp.eq.s32.totalorder %s23, 0
    %p145 = por %p143, %p144
    %p146 = scmp.ne.s32.totalorder %s132, %s133
    %p147 = scmp.eq.s32.totalorder %s24, 7
    %p148 = por %p146, %p147
    %p150 = scmp.ne.s32.totalorder %s133, %s149
    %p151 = scmp.eq.s32.totalorder %s24, 0
    %p152 = por %p150, %p151
    %s154 = sadd.s32 %s153, 1
    %p157 = scmp.eq.s32.totalorder %s18, 7
    %p158 = scmp.ne.s32.totalorder %s153, %s155
    %p159 = scmp.eq.s32.totalorder %s18, 0
    %p160 = por %p158, %p159
    %p161 = scmp.ne.s32.totalorder %s153, %s155
    %p162 = scmp.eq.s32.totalorder %s23, 7
    %p163 = por %p161, %p162
    %p164 = scmp.ne.s32.totalorder %s155, %s156
    %p165 = scmp.eq.s32.totalorder %s23, 0
    %p166 = por %p164, %p165
    %p167 = scmp.ne.s32.totalorder %s155, %s156
    %p168 = scmp.eq.s32.totalorder %s24, 7
    %p169 = por %p167, %p168
    %p171 = scmp.ne.s32.totalorder %s156, %s170
    %p172 = scmp.eq.s32.totalorder %s24, 0
    %p173 = por %p171, %p172
    %s175 = sadd.s32 %s174, 1
    %p178 = scmp.eq.s32.totalorder %s18, 7
    %p179 = scmp.ne.s32.totalorder %s174, %s176
    %p180 = scmp.eq.s32.totalorder %s18, 0
    %p181 = por %p179, %p180
    %p182 = scmp.ne.s32.totalorder %s174, %s176
    %p183 = scmp.eq.s32.totalorder %s23, 7
    %p184 = por %p182, %p183
    %p185 = scmp.ne.s32.totalorder %s176, %s177
    %p186 = scmp.eq.s32.totalorder %s23, 0
    %p187 = por %p185, %p186
    %p188 = scmp.ne.s32.totalorder %s176, %s177
    %p189 = scmp.eq.s32.totalorder %s24, 7
    %p190 = por %p188, %p189
    %p192 = scmp.ne.s32.totalorder %s177, %s191
    %p193 = scmp.eq.s32.totalorder %s24, 0
    %p194 = por %p192, %p193
    %s196 = sadd.s32 %s195, 1
    %p199 = scmp.eq.s32.totalorder %s18, 7
    %p200 = scmp.ne.s32.totalorder %s195, %s197
    %p201 = scmp.eq.s32.totalorder %s18, 0
    %p202 = por %p200, %p201
    %p203 = scmp.ne.s32.totalorder %s195, %s197
    %p204 = scmp.eq.s32.totalorder %s23, 7
    %p205 = por %p203, %p204
    %p206 = scmp.ne.s32.totalorder %s197, %s198
    %p207 = scmp.eq.s32.totalorder %s23, 0
    %p208 = por %p206, %p207
    %p209 = scmp.ne.s32.totalorder %s197, %s198
    %p210 = scmp.eq.s32.totalorder %s24, 7
    %p211 = por %p209, %p210
    %p213 = scmp.ne.s32.totalorder %s198, %s212
    %p214 = scmp.eq.s32.totalorder %s24, 0
    %p215 = por %p213, %p214
    %s217 = sadd.s32 %s216, 1
    %p220 = scmp.eq.s32.totalorder %s18, 7
    %p221 = scmp.ne.s32.totalorder %s216, %s218
    %p222 = scmp.eq.s32.totalorder %s18, 0
    %p223 = por %p221, %p222
    %p224 = scmp.ne.s32.totalorder %s216, %s218
    %p225 = scmp.eq.s32.totalorder %s23, 7
    %p226 = por %p224, %p225
    %p227 = scmp.ne.s32.totalorder %s218, %s219
    %p228 = scmp.eq.s32.totalorder %s23, 0
    %p229 = por %p227, %p228
    %p230 = scmp.ne.s32.totalorder %s218, %s219
    %p231 = scmp.eq.s32.totalorder %s24, 7
    %p232 = por %p230, %p231
    %p234 = scmp.ne.s32.totalorder %s219, %s233
    %p235 = scmp.eq.s32.totalorder %s24, 0
    %p236 = por %p234, %p235
    %s238 = sadd.s32 %s237, 1
    %p241 = scmp.eq.s32.totalorder %s18, 7
    %p242 = scmp.ne.s32.totalorder %s237, %s239
    %p243 = scmp.eq.s32.totalorder %s18, 0
    %p244 = por %p242, %p243
    %p245 = scmp.ne.s32.totalorder %s237, %s239
    %p246 = scmp.eq.s32.totalorder %s23, 7
    %p247 = por %p245, %p246
    %p248 = scmp.ne.s32.totalorder %s239, %s240
    %p249 = scmp.eq.s32.totalorder %s23, 0
    %p250 = por %p248, %p249
    %p251 = scmp.ne.s32.totalorder %s239, %s240
    %p252 = scmp.eq.s32.totalorder %s24, 7
    %p253 = por %p251, %p252
    %p255 = scmp.ne.s32.totalorder %s240, %s254
    %p256 = scmp.eq.s32.totalorder %s24, 0
    %p257 = por %p255, %p256
    %s259 = sadd.s32 %s258, 1
    %p262 = scmp.eq.s32.totalorder %s18, 7
    %p263 = scmp.ne.s32.totalorder %s258, %s260
    %p264 = scmp.eq.s32.totalorder %s18, 0
    %p265 = por %p263, %p264
    %p266 = scmp.ne.s32.totalorder %s258, %s260
    %p267 = scmp.eq.s32.totalorder %s23, 7
    %p268 = por %p266, %p267
    %p269 = scmp.ne.s32.totalorder %s260, %s261
    %p270 = scmp.eq.s32.totalorder %s23, 0
    %p271 = por %p269, %p270
    %p272 = scmp.ne.s32.totalorder %s260, %s261
    %p273 = scmp.eq.s32.totalorder %s24, 7
    %p274 = por %p272, %p273
    %p276 = scmp.ne.s32.totalorder %s261, %s275
    %p277 = scmp.eq.s32.totalorder %s24, 0
    %p278 = por %p276, %p277
    %s280 = sadd.s32 %s279, 1
    %p283 = scmp.eq.s32.totalorder %s18, 7
    %p284 = scmp.ne.s32.totalorder %s279, %s281
    %p285 = scmp.eq.s32.totalorder %s18, 0
    %p286 = por %p284, %p285
    %p287 = scmp.ne.s32.totalorder %s279, %s281
    %p288 = scmp.eq.s32.totalorder %s23, 7
    %p289 = por %p287, %p288
    %p290 = scmp.ne.s32.totalorder %s281, %s282
    %p291 = scmp.eq.s32.totalorder %s23, 0
    %p292 = por %p290, %p291
    %p293 = scmp.ne.s32.totalorder %s281, %s282
    %p294 = scmp.eq.s32.totalorder %s24, 7
    %p295 = por %p293, %p294
    %p297 = scmp.ne.s32.totalorder %s282, %s296
    %p298 = scmp.eq.s32.totalorder %s24, 0
    %p299 = por %p297, %p298
    %s301 = sadd.s32 %s300, 1
    %p304 = scmp.eq.s32.totalorder %s18, 7
    %p305 = scmp.ne.s32.totalorder %s300, %s302
    %p306 = scmp.eq.s32.totalorder %s18, 0
    %p307 = por %p305, %p306
    %p308 = scmp.ne.s32.totalorder %s300, %s302
    %p309 = scmp.eq.s32.totalorder %s23, 7
    %p310 = por %p308, %p309
    %p311 = scmp.ne.s32.totalorder %s302, %s303
    %p312 = scmp.eq.s32.totalorder %s23, 0
    %p313 = por %p311, %p312
    %p314 = scmp.ne.s32.totalorder %s302, %s303
    %p315 = scmp.eq.s32.totalorder %s24, 7
    %p316 = por %p314, %p315
    %p318 = scmp.ne.s32.totalorder %s303, %s317
    %p319 = scmp.eq.s32.totalorder %s24, 0
    %p320 = por %p318, %p319
    %s321 = ssub.s32 %s25, %s44
    %s322 = ssub.s32 %s26, %s40
    %s323 = sor.u32 %s321, %s322
    %p324 = scmp.eq.s32.totalorder %s323, 0
    %s326 = sadd.s32 %s325, 1
    %s327 = scalar_select %p324, %s325, %s326
    %p330 = pneg %p324
    %p331 = scmp.eq.s32.totalorder %s18, 7
    %p332 = por %p330, %p331
    %p333 = scmp.ne.s32.totalorder %s325, %s328
    %p334 = scmp.eq.s32.totalorder %s18, 0
    %p335 = por %p333, %p334
    %p336 = scmp.ne.s32.totalorder %s325, %s328
    %p337 = scmp.eq.s32.totalorder %s23, 7
    %p338 = por %p336, %p337
    %p339 = scmp.ne.s32.totalorder %s328, %s329
    %p340 = scmp.eq.s32.totalorder %s23, 0
    %p341 = por %p339, %p340
    %p342 = scmp.ne.s32.totalorder %s328, %s329
    %p343 = scmp.eq.s32.totalorder %s24, 7
    %p344 = por %p342, %p343
    %p346 = scmp.ne.s32.totalorder %s329, %s345
    %p347 = scmp.eq.s32.totalorder %s24, 0
    %p348 = por %p346, %p347
    %p349 = scmp.le.s32.totalorder 1, %s18
    %p350 = scmp.lt.s32.totalorder %s18, 9
    %p351 = pnand %p349, %p350
    %p352 = pneg %p351
    // Predicated region
    $region9: #{tpu_custom_call.1} parent=5 // pred_check
      _
    $region10: #{tpu_custom_call.1} parent=5 // pred_check_branch
      %354 = sbr.rel (%p351) target = $region12
    $region11: #{tpu_custom_call.1} parent=5 // pred_region
      %s355 = ssub.s32 %s18, 1
      // Predicated region
      $region13: #{tpu_custom_call.1} parent=11 // pred_check
        %p356 = pneg %p166
      $region14: #{tpu_custom_call.1} parent=11 // pred_check_branch
        %358 = sbr.rel (%p356) target = $region16
      $region15: #{tpu_custom_call.1} parent=11 // pred_region
        _
      $region16: #{tpu_custom_call.1} parent=11 // pred_fallthru
        _
      // Predicated region
      $region17: #{tpu_custom_call.1} parent=11 // pred_check
        %p359 = pneg %p187
      $region18: #{tpu_custom_call.1} parent=11 // pred_check_branch
        %361 = sbr.rel (%p359) target = $region20
      $region19: #{tpu_custom_call.1} parent=11 // pred_region
        _
      $region20: #{tpu_custom_call.1} parent=11 // pred_fallthru
        _
      // Predicated region
      $region21: #{tpu_custom_call.1} parent=11 // pred_check
        %p362 = pneg %p208
      $region22: #{tpu_custom_call.1} parent=11 // pred_check_branch
        %364 = sbr.rel (%p362) target = $region24
      $region23: #{tpu_custom_call.1} parent=11 // pred_region
        _
      $region24: #{tpu_custom_call.1} parent=11 // pred_fallthru
        _
      // Predicated region
      $region25: #{tpu_custom_call.1} parent=11 // pred_check
        %p365 = pneg %p229
      $region26: #{tpu_custom_call.1} parent=11 // pred_check_branch
        %367 = sbr.rel (%p365) target = $region28
      $region27: #{tpu_custom_call.1} parent=11 // pred_region
        _
      $region28: #{tpu_custom_call.1} parent=11 // pred_fallthru
        _
      // Predicated region
      $region29: #{tpu_custom_call.1} parent=11 // pred_check
        %p368 = pneg %p250
      $region30: #{tpu_custom_call.1} parent=11 // pred_check_branch
        %370 = sbr.rel (%p368) target = $region32
      $region31: #{tpu_custom_call.1} parent=11 // pred_region
        _
      $region32: #{tpu_custom_call.1} parent=11 // pred_fallthru
        _
      // Predicated region
      $region33: #{tpu_custom_call.1} parent=11 // pred_check
        %p371 = pneg %p271
      $region34: #{tpu_custom_call.1} parent=11 // pred_check_branch
        %373 = sbr.rel (%p371) target = $region36
      $region35: #{tpu_custom_call.1} parent=11 // pred_region
        _
      $region36: #{tpu_custom_call.1} parent=11 // pred_fallthru
        _
      // Predicated region
      $region37: #{tpu_custom_call.1} parent=11 // pred_check
        %p374 = pneg %p292
      $region38: #{tpu_custom_call.1} parent=11 // pred_check_branch
        %376 = sbr.rel (%p374) target = $region40
      $region39: #{tpu_custom_call.1} parent=11 // pred_region
        _
      $region40: #{tpu_custom_call.1} parent=11 // pred_fallthru
        _
      // Predicated region
      $region41: #{tpu_custom_call.1} parent=11 // pred_check
        %p377 = pneg %p313
      $region42: #{tpu_custom_call.1} parent=11 // pred_check_branch
        %379 = sbr.rel (%p377) target = $region44
      $region43: #{tpu_custom_call.1} parent=11 // pred_region
        _
      $region44: #{tpu_custom_call.1} parent=11 // pred_fallthru
        _
    $region12: #{tpu_custom_call.1} parent=5 // pred_fallthru
      _
    %p380 = scmp.lt.s32.totalorder %s18, 8
    // Predicated region
    $region45: #{tpu_custom_call.1} parent=5 // pred_check
      %p381 = pneg %p380
    $region46: #{tpu_custom_call.1} parent=5 // pred_check_branch
      %383 = sbr.rel (%p381) target = $region48
    $region47: #{tpu_custom_call.1} parent=5 // pred_region
      // Predicated region
      $region49: #{tpu_custom_call.1} parent=47 // pred_check
        %p384 = pneg %p59
      $region50: #{tpu_custom_call.1} parent=47 // pred_check_branch
        %386 = sbr.rel (%p384) target = $region52
      $region51: #{tpu_custom_call.1} parent=47 // pred_region
        %s387 = smul.u32 16, %s26
        %p388 = scmp.lt.s32.totalorder %s25, 1
        %s389 = scalar_select %p388, %s25, 1
        %p390 = scmp.lt.s32.totalorder %s387, 31
        %s391 = scalar_select %p390, %s387, 31
        %s392 = smul.addr %s389, 32
        %s393 = sadd.s32 %s391, %s392
        %s394 = smul.addr %s393, 8
        %s395 = scalar_lea.vmem %s0, %s394
        %s396 = smul.u32 16, %s26
      $region52: #{tpu_custom_call.1} parent=47 // pred_fallthru
        _
      // Predicated region
      $region53: #{tpu_custom_call.1} parent=47 // pred_check
        %p397 = pneg %p87
      $region54: #{tpu_custom_call.1} parent=47 // pred_check_branch
        %399 = sbr.rel (%p397) target = $region56
      $region55: #{tpu_custom_call.1} parent=47 // pred_region
        %s400 = smul.u32 16, %s27
        %p401 = scmp.lt.s32.totalorder %s25, 1
        %s402 = scalar_select %p401, %s25, 1
        %p403 = scmp.lt.s32.totalorder %s400, 31
        %s404 = scalar_select %p403, %s400, 31
        %s405 = smul.addr %s402, 32
        %s406 = sadd.s32 %s404, %s405
        %s407 = smul.addr %s406, 8
        %s408 = scalar_lea.vmem %s1, %s407
        %s409 = smul.u32 16, %s27
      $region56: #{tpu_custom_call.1} parent=47 // pred_fallthru
        _
      // Predicated region
      $region57: #{tpu_custom_call.1} parent=47 // pred_check
        %p410 = pneg %p113
      $region58: #{tpu_custom_call.1} parent=47 // pred_check_branch
        %412 = sbr.rel (%p410) target = $region60
      $region59: #{tpu_custom_call.1} parent=47 // pred_region
        %p413 = scmp.lt.s32.totalorder %s25, 1
        %s414 = scalar_select %p413, %s25, 1
        %s415 = scalar_lea.vmem %s2, %s414
      $region60: #{tpu_custom_call.1} parent=47 // pred_fallthru
        _
      // Predicated region
      $region61: #{tpu_custom_call.1} parent=47 // pred_check
        %p416 = pneg %p139
      $region62: #{tpu_custom_call.1} parent=47 // pred_check_branch
        %418 = sbr.rel (%p416) target = $region64
      $region63: #{tpu_custom_call.1} parent=47 // pred_region
        %p419 = scmp.lt.s32.totalorder %s25, 1
        %s420 = scalar_select %p419, %s25, 1
        %s421 = scalar_lea.vmem %s3, %s420
      $region64: #{tpu_custom_call.1} parent=47 // pred_fallthru
        _
    $region48: #{tpu_custom_call.1} parent=5 // pred_fallthru
      _
    %p422 = scmp.le.s32.totalorder 1, %s18
    %p423 = scmp.lt.s32.totalorder %s18, 9
    %p424 = pnand %p422, %p423
    %p425 = pneg %p424
    // Predicated region
    $region65: #{tpu_custom_call.1} parent=5 // pred_check
      _
    $region66: #{tpu_custom_call.1} parent=5 // pred_check_branch
      %427 = sbr.rel (%p424) target = $region68
    $region67: #{tpu_custom_call.1} parent=5 // pred_region
      %s428 = ssub.s32 %s18, 1
      %s429 = smul.u32 16, %s29
      %p430 = scmp.lt.s32.totalorder %s28, 1
      %s431 = scalar_select %p430, %s28, 1
      %p432 = scmp.lt.s32.totalorder %s429, 31
      %s433 = scalar_select %p432, %s429, 31
      %s434 = smul.addr %s431, 32
      %s435 = sadd.s32 %s433, %s434
      %s436 = smul.addr %s435, 8
      %s437 = scalar_lea.vmem %s0, %s436
      %p438 = pneg %p65
      %p439 = pneg %p62
      %s440 = smul.u32 16, %s30
      %p441 = scmp.lt.s32.totalorder %s28, 1
      %s442 = scalar_select %p441, %s28, 1
      %p443 = scmp.lt.s32.totalorder %s440, 31
      %s444 = scalar_select %p443, %s440, 31
      %s445 = smul.addr %s442, 32
      %s446 = sadd.s32 %s444, %s445
      %s447 = smul.addr %s446, 8
      %s448 = scalar_lea.vmem %s1, %s447
      %p449 = pneg %p93
      %p450 = pneg %p90
      %p451 = scmp.lt.s32.totalorder %s28, 1
      %s452 = scalar_select %p451, %s28, 1
      %s453 = scalar_lea.vmem %s2, %s452
      %p454 = pneg %p119
      %p455 = pneg %p116
      %p456 = scmp.lt.s32.totalorder %s28, 1
      %s457 = scalar_select %p456, %s28, 1
      %s458 = scalar_lea.vmem %s3, %s457
      %p459 = pneg %p145
      %p460 = pneg %p142
      %p461 = pneg %p166
      %p462 = pneg %p163
      %p463 = pneg %p187
      %p464 = pneg %p184
      %p465 = pneg %p208
      %p466 = pneg %p205
      %p467 = pneg %p229
      %p468 = pneg %p226
      %p469 = pneg %p250
      %p470 = pneg %p247
      %p471 = pneg %p271
      %p472 = pneg %p268
      %p473 = pneg %p292
      %p474 = pneg %p289
      %p475 = pneg %p313
      %p476 = pneg %p310
      %p477 = pneg %p341
      %p478 = pneg %p338
      %s479 = smul.u32 16, %s29
      %p480 = scmp.lt.s32.totalorder %s28, 1
      %s481 = scalar_select %p480, %s28, 1
      %p482 = scmp.lt.s32.totalorder %s479, 31
      %s483 = scalar_select %p482, %s479, 31
      %s484 = smul.addr %s481, 32
      %s485 = sadd.s32 %s483, %s484
      %s486 = smul.addr %s485, 8
      %s487 = scalar_lea.vmem %s12, %s486
      %s488 = smul.u32 16, %s29
      %p489 = scmp.lt.s32.totalorder %s28, 1
      %s490 = scalar_select %p489, %s28, 1
      %p491 = scmp.lt.s32.totalorder %s488, 31
      %s492 = scalar_select %p491, %s488, 31
      %s493 = smul.addr %s490, 32
      %s494 = sadd.s32 %s492, %s493
      %s495 = smul.addr %s494, 8
      %s496 = scalar_lea.vmem %s0, %s495
      %s497 = smul.u32 16, %s29
      %s498 = smul.u32 16, %s30
      %p499 = scmp.lt.s32.totalorder %s28, 1
      %s500 = scalar_select %p499, %s28, 1
      %p501 = scmp.lt.s32.totalorder %s498, 31
      %s502 = scalar_select %p501, %s498, 31
      %s503 = smul.addr %s500, 32
      %s504 = sadd.s32 %s502, %s503
      %s505 = smul.addr %s504, 8
      %s506 = scalar_lea.vmem %s1, %s505
      %s507 = smul.u32 16, %s30
      %p508 = scmp.lt.s32.totalorder %s28, 1
      %s509 = scalar_select %p508, %s28, 1
      %s510 = scalar_lea.vmem %s2, %s509
      %p511 = scmp.lt.s32.totalorder %s28, 1
      %s512 = scalar_select %p511, %s28, 1
      %s513 = scalar_lea.vmem %s3, %s512
      %s514 = smul.u32 16, %s29
      %p515 = scmp.lt.s32.totalorder %s28, 1
      %s516 = scalar_select %p515, %s28, 1
      %p517 = scmp.lt.s32.totalorder %s514, 31
      %s518 = scalar_select %p517, %s514, 31
      %s519 = smul.addr %s516, 32
      %s520 = sadd.s32 %s518, %s519
      %s521 = smul.addr %s520, 8
      %s522 = scalar_lea.vmem %s12, %s521
      %s523 = smul.u32 16, %s29
      %p525 = scmp.eq.s32.totalorder %s30, 0
      // Predicated region
      $region69: #{tpu_custom_call.1} parent=67 // pred_check
        %p526 = pneg %p525
      $region70: #{tpu_custom_call.1} parent=67 // pred_check_branch
        %528 = sbr.rel (%p526) target = $region72
      $region71: #{tpu_custom_call.1} parent=67 // pred_region
        %v529 = vld [vmem:[%s496] sm:$0xff]
        %v530 = vld [vmem:[%s496 + $0x8] sm:$0xff]
        %v531 = vld [vmem:[%s496 + $0x10] sm:$0xff]
        %v532 = vld [vmem:[%s496 + $0x18] sm:$0xff]
        %v533 = vld [vmem:[%s496 + $0x20] sm:$0xff]
        %v534 = vld [vmem:[%s496 + $0x28] sm:$0xff]
        %v535 = vld [vmem:[%s496 + $0x30] sm:$0xff]
        %v536 = vld [vmem:[%s496 + $0x38] sm:$0xff]
        %v537 = vld [vmem:[%s496 + $0x40] sm:$0xff]
        %v538 = vld [vmem:[%s496 + $0x48] sm:$0xff]
        %v539 = vld [vmem:[%s496 + $0x50] sm:$0xff]
        %v540 = vld [vmem:[%s496 + $0x58] sm:$0xff]
        %v541 = vld [vmem:[%s496 + $0x60] sm:$0xff]
        %v542 = vld [vmem:[%s496 + $0x68] sm:$0xff]
        %v543 = vld [vmem:[%s496 + $0x70] sm:$0xff]
        %v544 = vld [vmem:[%s496 + $0x78] sm:$0xff]
        %v545 = vld [vmem:[%s510] sm:$0x1]
        %v547 = vlaneseq
        %v548 = vshrl.u32 %v547, 7
        %v549 = vsub.s32 0, %v548
        %v550 = vrot.slane %v545, %v549
        %v552 = vmul.f32 %v529, %v550
        %v553 = vmul.f32 %v530, %v550
        %v554 = vmul.f32 %v531, %v550
        %v555 = vmul.f32 %v532, %v550
        %v556 = vmul.f32 %v533, %v550
        %v557 = vmul.f32 %v534, %v550
        %v558 = vmul.f32 %v535, %v550
        %v559 = vmul.f32 %v536, %v550
        %v560 = vmul.f32 %v537, %v550
        %v561 = vmul.f32 %v538, %v550
        %v562 = vmul.f32 %v539, %v550
        %v563 = vmul.f32 %v540, %v550
        %v564 = vmul.f32 %v541, %v550
        %v565 = vmul.f32 %v542, %v550
        %v566 = vmul.f32 %v543, %v550
        %v567 = vmul.f32 %v544, %v550
        %v568 = vld [vmem:[%s513] sm:$0x1]
        %v570 = vlaneseq
        %v571 = vshrl.u32 %v570, 7
        %v572 = vsub.s32 0, %v571
        %v573 = vrot.slane %v568, %v572
        %v575 = vadd.f32 %v552, %v573
        %v576 = vadd.f32 %v553, %v573
        %v577 = vadd.f32 %v554, %v573
        %v578 = vadd.f32 %v555, %v573
        %v579 = vadd.f32 %v556, %v573
        %v580 = vadd.f32 %v557, %v573
        %v581 = vadd.f32 %v558, %v573
        %v582 = vadd.f32 %v559, %v573
        %v583 = vadd.f32 %v560, %v573
        %v584 = vadd.f32 %v561, %v573
        %v585 = vadd.f32 %v562, %v573
        %v586 = vadd.f32 %v563, %v573
        %v587 = vadd.f32 %v564, %v573
        %v588 = vadd.f32 %v565, %v573
        %v589 = vadd.f32 %v566, %v573
        %v590 = vadd.f32 %v567, %v573
        %v591 = vpack.c.bf16 %v576, %v575
        %v592 = vpack.c.bf16 %v578, %v577
        %v593 = vpack.c.bf16 %v580, %v579
        %v594 = vpack.c.bf16 %v582, %v581
        %v595 = vpack.c.bf16 %v584, %v583
        %v596 = vpack.c.bf16 %v586, %v585
        %v597 = vpack.c.bf16 %v588, %v587
        %v598 = vpack.c.bf16 %v590, %v589
        %v599 = vld [vmem:[%s4] sm:$0xf]
        %v600 = vld [vmem:[%s4 + $0x4] sm:$0xf]
        %v601 = vld [vmem:[%s4 + $0x8] sm:$0xf]
        %v602 = vld [vmem:[%s4 + $0xc] sm:$0xf]
        %v603 = vld [vmem:[%s4 + $0x10] sm:$0xf]
        %v604 = vld [vmem:[%s4 + $0x14] sm:$0xf]
        %v605 = vld [vmem:[%s4 + $0x18] sm:$0xf]
        %v606 = vld [vmem:[%s4 + $0x1c] sm:$0xf]
        %v607 = vld [vmem:[%s5] sm:$0x1]
        %v609 = vlaneseq
        %v610 = vshrl.u32 %v609, 7
        %v611 = vsub.s32 0, %v610
        %v612 = vrot.slane %v607, %v611
        %v622 = vunpack.c.l.b16 %v599
        %v623 = vunpack.c.l.b16 %v600
        %v624 = vunpack.c.l.b16 %v601
        %v625 = vunpack.c.l.b16 %v602
        %v626 = vunpack.c.l.b16 %v603
        %v627 = vunpack.c.l.b16 %v604
        %v628 = vunpack.c.l.b16 %v605
        %v629 = vunpack.c.l.b16 %v606
        %v630 = vpack.c.b16 %v623, %v622
        %v631 = vpack.c.b16 %v625, %v624
        %v632 = vpack.c.b16 %v627, %v626
        %v633 = vpack.c.b16 %v629, %v628
        %vm638 = vcmask 523264
        %v640 = vsel %vm638, %v591, 0
        %v643 = vsel %vm638, %v592, 0
        %v646 = vsel %vm638, %v593, 0
        %v649 = vsel %vm638, %v594, 0
        %v652 = vsel %vm638, %v595, 0
        %v655 = vsel %vm638, %v596, 0
        %v658 = vsel %vm638, %v597, 0
        %v661 = vsel %vm638, %v598, 0
        %663 = vmatprep.subr.bf16.mxu0 0
        %664 = vmatpush1.bf16.msra.mxu0 %v630
        %665 = vmatprep.subr.bf16.mxu0 0
        %666 = vmatpush1.bf16.msra.mxu0 %v631
        %667 = vmatprep.subr.bf16.mxu0 0
        %668 = vmatpush1.bf16.msra.mxu0 %v632
        %669 = vmatprep.subr.bf16.mxu0 0
        %670 = vmatpush1.bf16.msra.mxu0 %v633
        %671 = vmatprep.subr.bf16.mxu0 0
        %672 = vmatpush1.bf16.msra.mxu0 0
        %673 = vmatprep.subr.bf16.mxu0 0
        %674 = vmatpush1.bf16.msra.mxu0 0
        %675 = vmatprep.subr.bf16.mxu0 0
        %676 = vmatpush1.bf16.msra.mxu0 0
        %677 = vmatprep.subr.bf16.mxu0 0
        %678 = vmatpush1.bf16.msra.mxu0 0
        %679 = vmatprep.subr.bf16.mxu0 0
        %680 = vmatpush1.bf16.msra.mxu0 0
        %681 = vmatprep.subr.bf16.mxu0 0
        %682 = vmatpush1.bf16.msra.mxu0 0
        %683 = vmatprep.subr.bf16.mxu0 0
        %684 = vmatpush1.bf16.msra.mxu0 0
        %685 = vmatprep.subr.bf16.mxu0 0
        %686 = vmatpush1.bf16.msra.mxu0 0
        %687 = vmatprep.subr.bf16.mxu0 0
        %688 = vmatpush1.bf16.msra.mxu0 0
        %689 = vmatprep.subr.bf16.mxu0 0
        %690 = vmatpush1.bf16.msra.mxu0 0
        %691 = vmatprep.subr.bf16.mxu0 0
        %692 = vmatpush1.bf16.msra.mxu0 0
        %693 = vmatprep.subr.bf16.mxu0 0
        %694 = vmatpush1.bf16.msra.mxu0 0
        %695 = vmatprep.mubr.bf16.mxu0 0
        %696 = vmatmul.mubr.bf16.gmra.mrb[0].mxu0 %v640
        %v697 = vpop.f32.mrb[0].mxu0
        %v698 = vadd.f32 %v612, %v697
        %v699 = vpop.f32.mrb[0].mxu0
        %v700 = vpop.f32.mrb[0].mxu0
        %v701 = vadd.f32 %v612, %v700
        %v702 = vpop.f32.mrb[0].mxu0
        %703 = vmatprep.mubr.bf16.mxu0 0
        %704 = vmatmul.mubr.bf16.gmra.mrb[0].mxu0 %v643
        %v705 = vpop.f32.mrb[0].mxu0
        %v706 = vadd.f32 %v612, %v705
        %v707 = vpop.f32.mrb[0].mxu0
        %v708 = vpop.f32.mrb[0].mxu0
        %v709 = vadd.f32 %v612, %v708
        %v710 = vpop.f32.mrb[0].mxu0
        %711 = vmatprep.mubr.bf16.mxu0 0
        %712 = vmatmul.mubr.bf16.gmra.mrb[0].mxu0 %v646
        %v713 = vpop.f32.mrb[0].mxu0
        %v714 = vadd.f32 %v612, %v713
        %v715 = vpop.f32.mrb[0].mxu0
        %v716 = vpop.f32.mrb[0].mxu0
        %v717 = vadd.f32 %v612, %v716
        %v718 = vpop.f32.mrb[0].mxu0
        %719 = vmatprep.mubr.bf16.mxu0 0
        %720 = vmatmul.mubr.bf16.gmra.mrb[0].mxu0 %v649
        %v721 = vpop.f32.mrb[0].mxu0
        %v722 = vadd.f32 %v612, %v721
        %v723 = vpop.f32.mrb[0].mxu0
        %v724 = vpop.f32.mrb[0].mxu0
        %v725 = vadd.f32 %v612, %v724
        %v726 = vpop.f32.mrb[0].mxu0
        %727 = vmatprep.mubr.bf16.mxu0 0
        %728 = vmatmul.mubr.bf16.gmra.mrb[0].mxu0 %v652
        %v729 = vpop.f32.mrb[0].mxu0
        %v730 = vadd.f32 %v612, %v729
        %v731 = vpop.f32.mrb[0].mxu0
        %v732 = vpop.f32.mrb[0].mxu0
        %v733 = vadd.f32 %v612, %v732
        %v734 = vpop.f32.mrb[0].mxu0
        %735 = vmatprep.mubr.bf16.mxu0 0
        %736 = vmatmul.mubr.bf16.gmra.mrb[0].mxu0 %v655
        %v737 = vpop.f32.mrb[0].mxu0
        %v738 = vadd.f32 %v612, %v737
        %v739 = vpop.f32.mrb[0].mxu0
        %v740 = vpop.f32.mrb[0].mxu0
        %v741 = vadd.f32 %v612, %v740
        %v742 = vpop.f32.mrb[0].mxu0
        %743 = vmatprep.mubr.bf16.mxu0 0
        %744 = vmatmul.mubr.bf16.gmra.mrb[0].mxu0 %v658
        %v745 = vpop.f32.mrb[0].mxu0
        %v746 = vadd.f32 %v612, %v745
        %v747 = vpop.f32.mrb[0].mxu0
        %v748 = vpop.f32.mrb[0].mxu0
        %v749 = vadd.f32 %v612, %v748
        %v750 = vpop.f32.mrb[0].mxu0
        %751 = vmatprep.mubr.bf16.mxu0 0
        %752 = vmatmul.mubr.bf16.gmra.mrb[0].mxu0 %v661
        %v753 = vpop.f32.mrb[0].mxu0
        %v754 = vadd.f32 %v612, %v753
        %v755 = vpop.f32.mrb[0].mxu0
        %v756 = vpop.f32.mrb[0].mxu0
        %v757 = vadd.f32 %v612, %v756
        %v758 = vpop.f32.mrb[0].mxu0
        %759 = vdwg.mxu0
        %v760 = vpack.c.bf16 %v701, %v698
        %v761 = vpack.c.bf16 %v709, %v706
        %v762 = vpack.c.bf16 %v717, %v714
        %v763 = vpack.c.bf16 %v725, %v722
        %v764 = vpack.c.bf16 %v733, %v730
        %v765 = vpack.c.bf16 %v741, %v738
        %v766 = vpack.c.bf16 %v749, %v746
        %v767 = vpack.c.bf16 %v757, %v754
        %768 = vst.msk [vmem:[#allocation2] sm:$0xff] %vm638, %v760
        %769 = vst.msk [vmem:[#allocation2 + $0x8] sm:$0xff] %vm638, %v761
        %770 = vst.msk [vmem:[#allocation2 + $0x10] sm:$0xff] %vm638, %v762
        %771 = vst.msk [vmem:[#allocation2 + $0x18] sm:$0xff] %vm638, %v763
        %772 = vst.msk [vmem:[#allocation2 + $0x20] sm:$0xff] %vm638, %v764
        %773 = vst.msk [vmem:[#allocation2 + $0x28] sm:$0xff] %vm638, %v765
        %774 = vst.msk [vmem:[#allocation2 + $0x30] sm:$0xff] %vm638, %v766
        %775 = vst.msk [vmem:[#allocation2 + $0x38] sm:$0xff] %vm638, %v767
        %vm776 = vcmask 7168
        %777 = vst.msk [vmem:[#allocation4] sm:$0xff] %vm776, -inf
        %778 = vst.msk [vmem:[#allocation4 + $0x8] sm:$0xff] %vm776, -inf
        %779 = vst.msk [vmem:[#allocation4 + $0x10] sm:$0xff] %vm776, -inf
        %780 = vst.msk [vmem:[#allocation4 + $0x18] sm:$0xff] %vm776, -inf
        %781 = vst.msk [vmem:[#allocation4 + $0x20] sm:$0xff] %vm776, -inf
        %782 = vst.msk [vmem:[#allocation4 + $0x28] sm:$0xff] %vm776, -inf
        %783 = vst.msk [vmem:[#allocation4 + $0x30] sm:$0xff] %vm776, -inf
        %784 = vst.msk [vmem:[#allocation4 + $0x38] sm:$0xff] %vm776, -inf
        %785 = vst.msk [vmem:[#allocation4 + $0x40] sm:$0xff] %vm776, -inf
        %786 = vst.msk [vmem:[#allocation4 + $0x48] sm:$0xff] %vm776, -inf
        %787 = vst.msk [vmem:[#allocation4 + $0x50] sm:$0xff] %vm776, -inf
        %788 = vst.msk [vmem:[#allocation4 + $0x58] sm:$0xff] %vm776, -inf
        %789 = vst.msk [vmem:[#allocation4 + $0x60] sm:$0xff] %vm776, -inf
        %790 = vst.msk [vmem:[#allocation4 + $0x68] sm:$0xff] %vm776, -inf
        %791 = vst.msk [vmem:[#allocation4 + $0x70] sm:$0xff] %vm776, -inf
        %792 = vst.msk [vmem:[#allocation4 + $0x78] sm:$0xff] %vm776, -inf
        %793 = vst.msk [vmem:[#allocation5] sm:$0xff] %vm776, 0.0
        %794 = vst.msk [vmem:[#allocation5 + $0x8] sm:$0xff] %vm776, 0.0
        %795 = vst.msk [vmem:[#allocation5 + $0x10] sm:$0xff] %vm776, 0.0
        %796 = vst.msk [vmem:[#allocation5 + $0x18] sm:$0xff] %vm776, 0.0
        %797 = vst.msk [vmem:[#allocation5 + $0x20] sm:$0xff] %vm776, 0.0
        %798 = vst.msk [vmem:[#allocation5 + $0x28] sm:$0xff] %vm776, 0.0
        %799 = vst.msk [vmem:[#allocation5 + $0x30] sm:$0xff] %vm776, 0.0
        %800 = vst.msk [vmem:[#allocation5 + $0x38] sm:$0xff] %vm776, 0.0
        %801 = vst.msk [vmem:[#allocation5 + $0x40] sm:$0xff] %vm776, 0.0
        %802 = vst.msk [vmem:[#allocation5 + $0x48] sm:$0xff] %vm776, 0.0
        %803 = vst.msk [vmem:[#allocation5 + $0x50] sm:$0xff] %vm776, 0.0
        %804 = vst.msk [vmem:[#allocation5 + $0x58] sm:$0xff] %vm776, 0.0
        %805 = vst.msk [vmem:[#allocation5 + $0x60] sm:$0xff] %vm776, 0.0
        %806 = vst.msk [vmem:[#allocation5 + $0x68] sm:$0xff] %vm776, 0.0
        %807 = vst.msk [vmem:[#allocation5 + $0x70] sm:$0xff] %vm776, 0.0
        %808 = vst.msk [vmem:[#allocation5 + $0x78] sm:$0xff] %vm776, 0.0
        %809 = vst.msk [vmem:[#allocation3] sm:$0xff] %vm638, 0.0
        %810 = vst.msk [vmem:[#allocation3 + $0x8] sm:$0xff] %vm638, 0.0
        %811 = vst.msk [vmem:[#allocation3 + $0x10] sm:$0xff] %vm638, 0.0
        %812 = vst.msk [vmem:[#allocation3 + $0x18] sm:$0xff] %vm638, 0.0
        %813 = vst.msk [vmem:[#allocation3 + $0x20] sm:$0xff] %vm638, 0.0
        %814 = vst.msk [vmem:[#allocation3 + $0x28] sm:$0xff] %vm638, 0.0
        %815 = vst.msk [vmem:[#allocation3 + $0x30] sm:$0xff] %vm638, 0.0
        %816 = vst.msk [vmem:[#allocation3 + $0x38] sm:$0xff] %vm638, 0.0
        %817 = vst.msk [vmem:[#allocation3 + $0x40] sm:$0xff] %vm638, 0.0
        %818 = vst.msk [vmem:[#allocation3 + $0x48] sm:$0xff] %vm638, 0.0
        %819 = vst.msk [vmem:[#allocation3 + $0x50] sm:$0xff] %vm638, 0.0
        %820 = vst.msk [vmem:[#allocation3 + $0x58] sm:$0xff] %vm638, 0.0
        %821 = vst.msk [vmem:[#allocation3 + $0x60] sm:$0xff] %vm638, 0.0
        %822 = vst.msk [vmem:[#allocation3 + $0x68] sm:$0xff] %vm638, 0.0
        %823 = vst.msk [vmem:[#allocation3 + $0x70] sm:$0xff] %vm638, 0.0
        %824 = vst.msk [vmem:[#allocation3 + $0x78] sm:$0xff] %vm638, 0.0
      $region72: #{tpu_custom_call.1} parent=67 // pred_fallthru
        _
      %v825 = vld [vmem:[%s506] sm:$0xff]
      %v826 = vld [vmem:[%s506 + $0x8] sm:$0xff]
      %v827 = vld [vmem:[%s506 + $0x10] sm:$0xff]
      %v828 = vld [vmem:[%s506 + $0x18] sm:$0xff]
      %v829 = vld [vmem:[%s506 + $0x20] sm:$0xff]
      %v830 = vld [vmem:[%s506 + $0x28] sm:$0xff]
      %v831 = vld [vmem:[%s506 + $0x30] sm:$0xff]
      %v832 = vld [vmem:[%s506 + $0x38] sm:$0xff]
      %v833 = vld [vmem:[%s506 + $0x40] sm:$0xff]
      %v834 = vld [vmem:[%s506 + $0x48] sm:$0xff]
      %v835 = vld [vmem:[%s506 + $0x50] sm:$0xff]
      %v836 = vld [vmem:[%s506 + $0x58] sm:$0xff]
      %v837 = vld [vmem:[%s506 + $0x60] sm:$0xff]
      %v838 = vld [vmem:[%s506 + $0x68] sm:$0xff]
      %v839 = vld [vmem:[%s506 + $0x70] sm:$0xff]
      %v840 = vld [vmem:[%s506 + $0x78] sm:$0xff]
      %v841 = vld [vmem:[%s510] sm:$0x1]
      %v843 = vlaneseq
      %v844 = vshrl.u32 %v843, 7
      %v845 = vsub.s32 0, %v844
      %v846 = vrot.slane %v841, %v845
      %v848 = vmul.f32 %v825, %v846
      %v849 = vmul.f32 %v826, %v846
      %v850 = vmul.f32 %v827, %v846
      %v851 = vmul.f32 %v828, %v846
      %v852 = vmul.f32 %v829, %v846
      %v853 = vmul.f32 %v830, %v846
      %v854 = vmul.f32 %v831, %v846
      %v855 = vmul.f32 %v832, %v846
      %v856 = vmul.f32 %v833, %v846
      %v857 = vmul.f32 %v834, %v846
      %v858 = vmul.f32 %v835, %v846
      %v859 = vmul.f32 %v836, %v846
      %v860 = vmul.f32 %v837, %v846
      %v861 = vmul.f32 %v838, %v846
      %v862 = vmul.f32 %v839, %v846
      %v863 = vmul.f32 %v840, %v846
      %v864 = vld [vmem:[%s513] sm:$0x1]
      %v866 = vlaneseq
      %v867 = vshrl.u32 %v866, 7
      %v868 = vsub.s32 0, %v867
      %v869 = vrot.slane %v864, %v868
      %v871 = vadd.f32 %v848, %v869
      %v872 = vadd.f32 %v849, %v869
      %v873 = vadd.f32 %v850, %v869
      %v874 = vadd.f32 %v851, %v869
      %v875 = vadd.f32 %v852, %v869
      %v876 = vadd.f32 %v853, %v869
      %v877 = vadd.f32 %v854, %v869
      %v878 = vadd.f32 %v855, %v869
      %v879 = vadd.f32 %v856, %v869
      %v880 = vadd.f32 %v857, %v869
      %v881 = vadd.f32 %v858, %v869
      %v882 = vadd.f32 %v859, %v869
      %v883 = vadd.f32 %v860, %v869
      %v884 = vadd.f32 %v861, %v869
      %v885 = vadd.f32 %v862, %v869
      %v886 = vadd.f32 %v863, %v869
      %v887 = vpack.c.bf16 %v872, %v871
      %v888 = vpack.c.bf16 %v874, %v873
      %v889 = vpack.c.bf16 %v876, %v875
      %v890 = vpack.c.bf16 %v878, %v877
      %v891 = vpack.c.bf16 %v880, %v879
      %v892 = vpack.c.bf16 %v882, %v881
      %v893 = vpack.c.bf16 %v884, %v883
      %v894 = vpack.c.bf16 %v886, %v885
      %v895 = vld [vmem:[%s6] sm:$0xf]
      %v896 = vld [vmem:[%s6 + $0x4] sm:$0xf]
      %v897 = vld [vmem:[%s6 + $0x8] sm:$0xf]
      %v898 = vld [vmem:[%s6 + $0xc] sm:$0xf]
      %v899 = vld [vmem:[%s6 + $0x10] sm:$0xf]
      %v900 = vld [vmem:[%s6 + $0x14] sm:$0xf]
      %v901 = vld [vmem:[%s6 + $0x18] sm:$0xf]
      %v902 = vld [vmem:[%s6 + $0x1c] sm:$0xf]
      %v903 = vld [vmem:[%s7] sm:$0x1]
      %v905 = vlaneseq
      %v906 = vshrl.u32 %v905, 7
      %v907 = vsub.s32 0, %v906
      %v908 = vrot.slane %v903, %v907
      %v918 = vunpack.c.l.b16 %v895
      %v919 = vunpack.c.l.b16 %v896
      %v920 = vunpack.c.l.b16 %v897
      %v921 = vunpack.c.l.b16 %v898
      %v922 = vunpack.c.l.b16 %v899
      %v923 = vunpack.c.l.b16 %v900
      %v924 = vunpack.c.l.b16 %v901
      %v925 = vunpack.c.l.b16 %v902
      %v926 = vpack.c.b16 %v919, %v918
      %v927 = vpack.c.b16 %v921, %v920
      %v928 = vpack.c.b16 %v923, %v922
      %v929 = vpack.c.b16 %v925, %v924
      %vm934 = vcmask 523264
      %v936 = vsel %vm934, %v887, 0
      %v939 = vsel %vm934, %v888, 0
      %v942 = vsel %vm934, %v889, 0
      %v945 = vsel %vm934, %v890, 0
      %v948 = vsel %vm934, %v891, 0
      %v951 = vsel %vm934, %v892, 0
      %v954 = vsel %vm934, %v893, 0
      %v957 = vsel %vm934, %v894, 0
      %959 = vmatprep.subr.bf16.mxu0 0
      %960 = vmatpush1.bf16.msra.mxu0 %v926
      %961 = vmatprep.subr.bf16.mxu0 0
      %962 = vmatpush1.bf16.msra.mxu0 %v927
      %963 = vmatprep.subr.bf16.mxu0 0
      %964 = vmatpush1.bf16.msra.mxu0 %v928
      %965 = vmatprep.subr.bf16.mxu0 0
      %966 = vmatpush1.bf16.msra.mxu0 %v929
      %967 = vmatprep.subr.bf16.mxu0 0
      %968 = vmatpush1.bf16.msra.mxu0 0
      %969 = vmatprep.subr.bf16.mxu0 0
      %970 = vmatpush1.bf16.msra.mxu0 0
      %971 = vmatprep.subr.bf16.mxu0 0
      %972 = vmatpush1.bf16.msra.mxu0 0
      %973 = vmatprep.subr.bf16.mxu0 0
      %974 = vmatpush1.bf16.msra.mxu0 0
      %975 = vmatprep.subr.bf16.mxu0 0
      %976 = vmatpush1.bf16.msra.mxu0 0
      %977 = vmatprep.subr.bf16.mxu0 0
      %978 = vmatpush1.bf16.msra.mxu0 0
      %979 = vmatprep.subr.bf16.mxu0 0
      %980 = vmatpush1.bf16.msra.mxu0 0
      %981 = vmatprep.subr.bf16.mxu0 0
      %982 = vmatpush1.bf16.msra.mxu0 0
      %983 = vmatprep.subr.bf16.mxu0 0
      %984 = vmatpush1.bf16.msra.mxu0 0
      %985 = vmatprep.subr.bf16.mxu0 0
      %986 = vmatpush1.bf16.msra.mxu0 0
      %987 = vmatprep.subr.bf16.mxu0 0
      %988 = vmatpush1.bf16.msra.mxu0 0
      %989 = vmatprep.subr.bf16.mxu0 0
      %990 = vmatpush1.bf16.msra.mxu0 0
      %991 = vmatprep.mubr.bf16.mxu0 0
      %992 = vmatmul.mubr.bf16.gmra.mrb[0].mxu0 %v936
      %v993 = vpop.f32.mrb[0].mxu0
      %v994 = vadd.f32 %v908, %v993
      %v995 = vpop.f32.mrb[0].mxu0
      %v996 = vpop.f32.mrb[0].mxu0
      %v997 = vadd.f32 %v908, %v996
      %v998 = vpop.f32.mrb[0].mxu0
      %999 = vmatprep.mubr.bf16.mxu0 0
      %1000 = vmatmul.mubr.bf16.gmra.mrb[0].mxu0 %v939
      %v1001 = vpop.f32.mrb[0].mxu0
      %v1002 = vadd.f32 %v908, %v1001
      %v1003 = vpop.f32.mrb[0].mxu0
      %v1004 = vpop.f32.mrb[0].mxu0
      %v1005 = vadd.f32 %v908, %v1004
      %v1006 = vpop.f32.mrb[0].mxu0
      %1007 = vmatprep.mubr.bf16.mxu0 0
      %1008 = vmatmul.mubr.bf16.gmra.mrb[0].mxu0 %v942
      %v1009 = vpop.f32.mrb[0].mxu0
      %v1010 = vadd.f32 %v908, %v1009
      %v1011 = vpop.f32.mrb[0].mxu0
      %v1012 = vpop.f32.mrb[0].mxu0
      %v1013 = vadd.f32 %v908, %v1012
      %v1014 = vpop.f32.mrb[0].mxu0
      %1015 = vmatprep.mubr.bf16.mxu0 0
      %1016 = vmatmul.mubr.bf16.gmra.mrb[0].mxu0 %v945
      %v1017 = vpop.f32.mrb[0].mxu0
      %v1018 = vadd.f32 %v908, %v1017
      %v1019 = vpop.f32.mrb[0].mxu0
      %v1020 = vpop.f32.mrb[0].mxu0
      %v1021 = vadd.f32 %v908, %v1020
      %v1022 = vpop.f32.mrb[0].mxu0
      %1023 = vmatprep.mubr.bf16.mxu0 0
      %1024 = vmatmul.mubr.bf16.gmra.mrb[0].mxu0 %v948
      %v1025 = vpop.f32.mrb[0].mxu0
      %v1026 = vadd.f32 %v908, %v1025
      %v1027 = vpop.f32.mrb[0].mxu0
      %v1028 = vpop.f32.mrb[0].mxu0
      %v1029 = vadd.f32 %v908, %v1028
      %v1030 = vpop.f32.mrb[0].mxu0
      %1031 = vmatprep.mubr.bf16.mxu0 0
      %1032 = vmatmul.mubr.bf16.gmra.mrb[0].mxu0 %v951
      %v1033 = vpop.f32.mrb[0].mxu0
      %v1034 = vadd.f32 %v908, %v1033
      %v1035 = vpop.f32.mrb[0].mxu0
      %v1036 = vpop.f32.mrb[0].mxu0
      %v1037 = vadd.f32 %v908, %v1036
      %v1038 = vpop.f32.mrb[0].mxu0
      %1039 = vmatprep.mubr.bf16.mxu0 0
      %1040 = vmatmul.mubr.bf16.gmra.mrb[0].mxu0 %v954
      %v1041 = vpop.f32.mrb[0].mxu0
      %v1042 = vadd.f32 %v908, %v1041
      %v1043 = vpop.f32.mrb[0].mxu0
      %v1044 = vpop.f32.mrb[0].mxu0
      %v1045 = vadd.f32 %v908, %v1044
      %v1046 = vpop.f32.mrb[0].mxu0
      %1047 = vmatprep.mubr.bf16.mxu0 0
      %1048 = vmatmul.mubr.bf16.gmra.mrb[0].mxu0 %v957
      %v1049 = vpop.f32.mrb[0].mxu0
      %v1050 = vadd.f32 %v908, %v1049
      %v1051 = vpop.f32.mrb[0].mxu0
      %v1052 = vpop.f32.mrb[0].mxu0
      %v1053 = vadd.f32 %v908, %v1052
      %v1054 = vpop.f32.mrb[0].mxu0
      %1055 = vdwg.mxu0
      %v1056 = vpack.c.bf16 %v997, %v994
      %v1057 = vpack.c.bf16 %v1005, %v1002
      %v1058 = vpack.c.bf16 %v1013, %v1010
      %v1059 = vpack.c.bf16 %v1021, %v1018
      %v1060 = vpack.c.bf16 %v1029, %v1026
      %v1061 = vpack.c.bf16 %v1037, %v1034
      %v1062 = vpack.c.bf16 %v1045, %v1042
      %v1063 = vpack.c.bf16 %v1053, %v1050
      %v1064 = vld [vmem:[%s8] sm:$0xf]
      %v1065 = vld [vmem:[%s8 + $0x4] sm:$0xf]
      %v1066 = vld [vmem:[%s8 + $0x8] sm:$0xf]
      %v1067 = vld [vmem:[%s8 + $0xc] sm:$0xf]
      %v1068 = vld [vmem:[%s8 + $0x10] sm:$0xf]
      %v1069 = vld [vmem:[%s8 + $0x14] sm:$0xf]
      %v1070 = vld [vmem:[%s8 + $0x18] sm:$0xf]
      %v1071 = vld [vmem:[%s8 + $0x1c] sm:$0xf]
      %v1072 = vld [vmem:[%s9] sm:$0x1]
      %v1074 = vlaneseq
      %v1075 = vshrl.u32 %v1074, 7
      %v1076 = vsub.s32 0, %v1075
      %v1077 = vrot.slane %v1072, %v1076
      %v1087 = vunpack.c.l.b16 %v1064
      %v1088 = vunpack.c.l.b16 %v1065
      %v1089 = vunpack.c.l.b16 %v1066
      %v1090 = vunpack.c.l.b16 %v1067
      %v1091 = vunpack.c.l.b16 %v1068
      %v1092 = vunpack.c.l.b16 %v1069
      %v1093 = vunpack.c.l.b16 %v1070
      %v1094 = vunpack.c.l.b16 %v1071
      %v1095 = vpack.c.b16 %v1088, %v1087
      %v1096 = vpack.c.b16 %v1090, %v1089
      %v1097 = vpack.c.b16 %v1092, %v1091
      %v1098 = vpack.c.b16 %v1094, %v1093
      %1103 = vmatprep.subr.bf16.mxu0 0
      %1104 = vmatpush1.bf16.msra.mxu0 %v1095
      %1105 = vmatprep.subr.bf16.mxu0 0
      %1106 = vmatpush1.bf16.msra.mxu0 %v1096
      %1107 = vmatprep.subr.bf16.mxu0 0
      %1108 = vmatpush1.bf16.msra.mxu0 %v1097
      %1109 = vmatprep.subr.bf16.mxu0 0
      %1110 = vmatpush1.bf16.msra.mxu0 %v1098
      %1111 = vmatprep.subr.bf16.mxu0 0
      %1112 = vmatpush1.bf16.msra.mxu0 0
      %1113 = vmatprep.subr.bf16.mxu0 0
      %1114 = vmatpush1.bf16.msra.mxu0 0
      %1115 = vmatprep.subr.bf16.mxu0 0
      %1116 = vmatpush1.bf16.msra.mxu0 0
      %1117 = vmatprep.subr.bf16.mxu0 0
      %1118 = vmatpush1.bf16.msra.mxu0 0
      %1119 = vmatprep.subr.bf16.mxu0 0
      %1120 = vmatpush1.bf16.msra.mxu0 0
      %1121 = vmatprep.subr.bf16.mxu0 0
      %1122 = vmatpush1.bf16.msra.mxu0 0
      %1123 = vmatprep.subr.bf16.mxu0 0
      %1124 = vmatpush1.bf16.msra.mxu0 0
      %1125 = vmatprep.subr.bf16.mxu0 0
      %1126 = vmatpush1.bf16.msra.mxu0 0
      %1127 = vmatprep.subr.bf16.mxu0 0
      %1128 = vmatpush1.bf16.msra.mxu0 0
      %1129 = vmatprep.subr.bf16.mxu0 0
      %1130 = vmatpush1.bf16.msra.mxu0 0
      %1131 = vmatprep.subr.bf16.mxu0 0
      %1132 = vmatpush1.bf16.msra.mxu0 0
      %1133 = vmatprep.subr.bf16.mxu0 0
      %1134 = vmatpush1.bf16.msra.mxu0 0
      %1135 = vmatprep.mubr.bf16.mxu0 0
      %1136 = vmatmul.mubr.bf16.gmra.mrb[0].mxu0 %v936
      %v1137 = vpop.f32.mrb[0].mxu0
      %v1138 = vadd.f32 %v1077, %v1137
      %v1139 = vpop.f32.mrb[0].mxu0
      %v1140 = vpop.f32.mrb[0].mxu0
      %v1141 = vadd.f32 %v1077, %v1140
      %v1142 = vpop.f32.mrb[0].mxu0
      %1143 = vmatprep.mubr.bf16.mxu0 0
      %1144 = vmatmul.mubr.bf16.gmra.mrb[0].mxu0 %v939
      %v1145 = vpop.f32.mrb[0].mxu0
      %v1146 = vadd.f32 %v1077, %v1145
      %v1147 = vpop.f32.mrb[0].mxu0
      %v1148 = vpop.f32.mrb[0].mxu0
      %v1149 = vadd.f32 %v1077, %v1148
      %v1150 = vpop.f32.mrb[0].mxu0
      %1151 = vmatprep.mubr.bf16.mxu0 0
      %1152 = vmatmul.mubr.bf16.gmra.mrb[0].mxu0 %v942
      %v1153 = vpop.f32.mrb[0].mxu0
      %v1154 = vadd.f32 %v1077, %v1153
      %v1155 = vpop.f32.mrb[0].mxu0
      %v1156 = vpop.f32.mrb[0].mxu0
      %v1157 = vadd.f32 %v1077, %v1156
      %v1158 = vpop.f32.mrb[0].mxu0
      %1159 = vmatprep.mubr.bf16.mxu0 0
      %1160 = vmatmul.mubr.bf16.gmra.mrb[0].mxu0 %v945
      %v1161 = vpop.f32.mrb[0].mxu0
      %v1162 = vadd.f32 %v1077, %v1161
      %v1163 = vpop.f32.mrb[0].mxu0
      %v1164 = vpop.f32.mrb[0].mxu0
      %v1165 = vadd.f32 %v1077, %v1164
      %v1166 = vpop.f32.mrb[0].mxu0
      %1167 = vmatprep.mubr.bf16.mxu0 0
      %1168 = vmatmul.mubr.bf16.gmra.mrb[0].mxu0 %v948
      %v1169 = vpop.f32.mrb[0].mxu0
      %v1170 = vadd.f32 %v1077, %v1169
      %v1171 = vpop.f32.mrb[0].mxu0
      %v1172 = vpop.f32.mrb[0].mxu0
      %v1173 = vadd.f32 %v1077, %v1172
      %v1174 = vpop.f32.mrb[0].mxu0
      %1175 = vmatprep.mubr.bf16.mxu0 0
      %1176 = vmatmul.mubr.bf16.gmra.mrb[0].mxu0 %v951
      %v1177 = vpop.f32.mrb[0].mxu0
      %v1178 = vadd.f32 %v1077, %v1177
      %v1179 = vpop.f32.mrb[0].mxu0
      %v1180 = vpop.f32.mrb[0].mxu0
      %v1181 = vadd.f32 %v1077, %v1180
      %v1182 = vpop.f32.mrb[0].mxu0
      %1183 = vmatprep.mubr.bf16.mxu0 0
      %1184 = vmatmul.mubr.bf16.gmra.mrb[0].mxu0 %v954
      %v1185 = vpop.f32.mrb[0].mxu0
      %v1186 = vadd.f32 %v1077, %v1185
      %v1187 = vpop.f32.mrb[0].mxu0
      %v1188 = vpop.f32.mrb[0].mxu0
      %v1189 = vadd.f32 %v1077, %v1188
      %v1190 = vpop.f32.mrb[0].mxu0
      %1191 = vmatprep.mubr.bf16.mxu0 0
      %1192 = vmatmul.mubr.bf16.gmra.mrb[0].mxu0 %v957
      %v1193 = vpop.f32.mrb[0].mxu0
      %v1194 = vadd.f32 %v1077, %v1193
      %v1195 = vpop.f32.mrb[0].mxu0
      %v1196 = vpop.f32.mrb[0].mxu0
      %v1197 = vadd.f32 %v1077, %v1196
      %v1198 = vpop.f32.mrb[0].mxu0
      %1199 = vdwg.mxu0
      %v1200 = vpack.c.bf16 %v1141, %v1138
      %v1201 = vpack.c.bf16 %v1149, %v1146
      %v1202 = vpack.c.bf16 %v1157, %v1154
      %v1203 = vpack.c.bf16 %v1165, %v1162
      %v1204 = vpack.c.bf16 %v1173, %v1170
      %v1205 = vpack.c.bf16 %v1181, %v1178
      %v1206 = vpack.c.bf16 %v1189, %v1186
      %v1207 = vpack.c.bf16 %v1197, %v1194
      %v1208 = vld [vmem:[#allocation2] sm:$0xff]
      %v1209 = vld [vmem:[#allocation2 + $0x8] sm:$0xff]
      %v1210 = vld [vmem:[#allocation2 + $0x10] sm:$0xff]
      %v1211 = vld [vmem:[#allocation2 + $0x18] sm:$0xff]
      %v1212 = vld [vmem:[#allocation2 + $0x20] sm:$0xff]
      %v1213 = vld [vmem:[#allocation2 + $0x28] sm:$0xff]
      %v1214 = vld [vmem:[#allocation2 + $0x30] sm:$0xff]
      %v1215 = vld [vmem:[#allocation2 + $0x38] sm:$0xff]
      %v1217 = vsel %vm934, %v1208, 0
      %v1220 = vsel %vm934, %v1209, 0
      %v1223 = vsel %vm934, %v1210, 0
      %v1226 = vsel %vm934, %v1211, 0
      %v1229 = vsel %vm934, %v1212, 0
      %v1232 = vsel %vm934, %v1213, 0
      %v1235 = vsel %vm934, %v1214, 0
      %v1238 = vsel %vm934, %v1215, 0
      %v1241 = vsel %vm934, %v1056, 0
      %v1244 = vsel %vm934, %v1057, 0
      %v1247 = vsel %vm934, %v1058, 0
      %v1250 = vsel %vm934, %v1059, 0
      %v1253 = vsel %vm934, %v1060, 0
      %v1256 = vsel %vm934, %v1061, 0
      %v1259 = vsel %vm934, %v1062, 0
      %v1262 = vsel %vm934, %v1063, 0
      %1264 = vmatprep.subr.bf16.mxu0 0
      %1265 = vmatpush1.bf16.xpose.msra.mxu0 %v1241
      %1266 = vmatprep.subr.bf16.mxu0 0
      %1267 = vmatpush1.bf16.xpose.msra.mxu0 %v1244
      %1268 = vmatprep.subr.bf16.mxu0 0
      %1269 = vmatpush1.bf16.xpose.msra.mxu0 %v1247
      %1270 = vmatprep.subr.bf16.mxu0 0
      %1271 = vmatpush1.bf16.xpose.msra.mxu0 %v1250
      %1272 = vmatprep.subr.bf16.mxu0 0
      %1273 = vmatpush1.bf16.xpose.msra.mxu0 %v1253
      %1274 = vmatprep.subr.bf16.mxu0 0
      %1275 = vmatpush1.bf16.xpose.msra.mxu0 %v1256
      %1276 = vmatprep.subr.bf16.mxu0 0
      %1277 = vmatpush1.bf16.xpose.msra.mxu0 %v1259
      %1278 = vmatprep.subr.bf16.mxu0 0
      %1279 = vmatpush1.bf16.xpose.msra.mxu0 %v1262
      %1280 = vmatprep.subr.bf16.mxu0 0
      %1281 = vmatpush1.bf16.xpose.msra.mxu0 0
      %1282 = vmatprep.subr.bf16.mxu0 0
      %1283 = vmatpush1.bf16.xpose.msra.mxu0 0
      %1284 = vmatprep.subr.bf16.mxu0 0
      %1285 = vmatpush1.bf16.xpose.msra.mxu0 0
      %1286 = vmatprep.subr.bf16.mxu0 0
      %1287 = vmatpush1.bf16.xpose.msra.mxu0 0
      %1288 = vmatprep.subr.bf16.mxu0 0
      %1289 = vmatpush1.bf16.xpose.msra.mxu0 0
      %1290 = vmatprep.subr.bf16.mxu0 0
      %1291 = vmatpush1.bf16.xpose.msra.mxu0 0
      %1292 = vmatprep.subr.bf16.mxu0 0
      %1293 = vmatpush1.bf16.xpose.msra.mxu0 0
      %1294 = vmatprep.subr.bf16.mxu0 0
      %1295 = vmatpush1.bf16.xpose.msra.mxu0 0
      %1296 = vmatprep.mubr.bf16.mxu0 0
      %1297 = vmatmul.mubr.bf16.gmra.mrb[0].mxu0 %v1217
      %v1298 = vpop.f32.mrb[0].mxu0
      %v1299 = vadd.f32 0.0, %v1298
      %v1300 = vpop.f32.mrb[0].mxu0
      %v1301 = vpop.f32.mrb[0].mxu0
      %v1302 = vadd.f32 0.0, %v1301
      %v1303 = vpop.f32.mrb[0].mxu0
      %1304 = vmatprep.mubr.bf16.mxu0 0
      %1305 = vmatmul.mubr.bf16.gmra.mrb[0].mxu0 %v1220
      %v1306 = vpop.f32.mrb[0].mxu0
      %v1307 = vadd.f32 0.0, %v1306
      %v1308 = vpop.f32.mrb[0].mxu0
      %v1309 = vpop.f32.mrb[0].mxu0
      %v1310 = vadd.f32 0.0, %v1309
      %v1311 = vpop.f32.mrb[0].mxu0
      %1312 = vmatprep.mubr.bf16.mxu0 0
      %1313 = vmatmul.mubr.bf16.gmra.mrb[0].mxu0 %v1223
      %v1314 = vpop.f32.mrb[0].mxu0
      %v1315 = vadd.f32 0.0, %v1314
      %v1316 = vpop.f32.mrb[0].mxu0
      %v1317 = vpop.f32.mrb[0].mxu0
      %v1318 = vadd.f32 0.0, %v1317
      %v1319 = vpop.f32.mrb[0].mxu0
      %1320 = vmatprep.mubr.bf16.mxu0 0
      %1321 = vmatmul.mubr.bf16.gmra.mrb[0].mxu0 %v1226
      %v1322 = vpop.f32.mrb[0].mxu0
      %v1323 = vadd.f32 0.0, %v1322
      %v1324 = vpop.f32.mrb[0].mxu0
      %v1325 = vpop.f32.mrb[0].mxu0
      %v1326 = vadd.f32 0.0, %v1325
      %v1327 = vpop.f32.mrb[0].mxu0
      %1328 = vmatprep.mubr.bf16.mxu0 0
      %1329 = vmatmul.mubr.bf16.gmra.mrb[0].mxu0 %v1229
      %v1330 = vpop.f32.mrb[0].mxu0
      %v1331 = vadd.f32 0.0, %v1330
      %v1332 = vpop.f32.mrb[0].mxu0
      %v1333 = vpop.f32.mrb[0].mxu0
      %v1334 = vadd.f32 0.0, %v1333
      %v1335 = vpop.f32.mrb[0].mxu0
      %1336 = vmatprep.mubr.bf16.mxu0 0
      %1337 = vmatmul.mubr.bf16.gmra.mrb[0].mxu0 %v1232
      %v1338 = vpop.f32.mrb[0].mxu0
      %v1339 = vadd.f32 0.0, %v1338
      %v1340 = vpop.f32.mrb[0].mxu0
      %v1341 = vpop.f32.mrb[0].mxu0
      %v1342 = vadd.f32 0.0, %v1341
      %v1343 = vpop.f32.mrb[0].mxu0
      %1344 = vmatprep.mubr.bf16.mxu0 0
      %1345 = vmatmul.mubr.bf16.gmra.mrb[0].mxu0 %v1235
      %v1346 = vpop.f32.mrb[0].mxu0
      %v1347 = vadd.f32 0.0, %v1346
      %v1348 = vpop.f32.mrb[0].mxu0
      %v1349 = vpop.f32.mrb[0].mxu0
      %v1350 = vadd.f32 0.0, %v1349
      %v1351 = vpop.f32.mrb[0].mxu0
      %1352 = vmatprep.mubr.bf16.mxu0 0
      %1353 = vmatmul.mubr.bf16.gmra.mrb[0].mxu0 %v1238
      %v1354 = vpop.f32.mrb[0].mxu0
      %v1355 = vadd.f32 0.0, %v1354
      %v1356 = vpop.f32.mrb[0].mxu0
      %v1357 = vpop.f32.mrb[0].mxu0
      %v1358 = vadd.f32 0.0, %v1357
      %v1359 = vpop.f32.mrb[0].mxu0
      %1360 = vdwg.mxu0
      %v1361 = vld [vmem:[#allocation4] sm:$0xff]
      %v1362 = vld [vmem:[#allocation4 + $0x8] sm:$0xff]
      %v1363 = vld [vmem:[#allocation4 + $0x10] sm:$0xff]
      %v1364 = vld [vmem:[#allocation4 + $0x18] sm:$0xff]
      %v1365 = vld [vmem:[#allocation4 + $0x20] sm:$0xff]
      %v1366 = vld [vmem:[#allocation4 + $0x28] sm:$0xff]
      %v1367 = vld [vmem:[#allocation4 + $0x30] sm:$0xff]
      %v1368 = vld [vmem:[#allocation4 + $0x38] sm:$0xff]
      %v1369 = vld [vmem:[#allocation4 + $0x40] sm:$0xff]
      %v1370 = vld [vmem:[#allocation4 + $0x48] sm:$0xff]
      %v1371 = vld [vmem:[#allocation4 + $0x50] sm:$0xff]
      %v1372 = vld [vmem:[#allocation4 + $0x58] sm:$0xff]
      %v1373 = vld [vmem:[#allocation4 + $0x60] sm:$0xff]
      %v1374 = vld [vmem:[#allocation4 + $0x68] sm:$0xff]
      %v1375 = vld [vmem:[#allocation4 + $0x70] sm:$0xff]
      %v1376 = vld [vmem:[#allocation4 + $0x78] sm:$0xff]
      %1377 = vmax.xlane.f32.xlu0 %v1299
      %v1378 = vpop.xlane.xlu0 %1377
      %1379 = vmax.xlane.f32.xlu0 %v1302
      %v1380 = vpop.xlane.xlu0 %1379
      %1381 = vmax.xlane.f32.xlu0 %v1307
      %v1382 = vpop.xlane.xlu0 %1381
      %1383 = vmax.xlane.f32.xlu0 %v1310
      %v1384 = vpop.xlane.xlu0 %1383
      %1385 = vmax.xlane.f32.xlu0 %v1315
      %v1386 = vpop.xlane.xlu0 %1385
      %1387 = vmax.xlane.f32.xlu0 %v1318
      %v1388 = vpop.xlane.xlu0 %1387
      %1389 = vmax.xlane.f32.xlu0 %v1323
      %v1390 = vpop.xlane.xlu0 %1389
      %1391 = vmax.xlane.f32.xlu0 %v1326
      %v1392 = vpop.xlane.xlu0 %1391
      %1393 = vmax.xlane.f32.xlu0 %v1331
      %v1394 = vpop.xlane.xlu0 %1393
      %1395 = vmax.xlane.f32.xlu0 %v1334
      %v1396 = vpop.xlane.xlu0 %1395
      %1397 = vmax.xlane.f32.xlu0 %v1339
      %v1398 = vpop.xlane.xlu0 %1397
      %1399 = vmax.xlane.f32.xlu0 %v1342
      %v1400 = vpop.xlane.xlu0 %1399
      %1401 = vmax.xlane.f32.xlu0 %v1347
      %v1402 = vpop.xlane.xlu0 %1401
      %1403 = vmax.xlane.f32.xlu0 %v1350
      %v1404 = vpop.xlane.xlu0 %1403
      %1405 = vmax.xlane.f32.xlu0 %v1355
      %v1406 = vpop.xlane.xlu0 %1405
      %1407 = vmax.xlane.f32.xlu0 %v1358
      %v1408 = vpop.xlane.xlu0 %1407
      %v1409 = vmax.f32 %v1361, %v1378
      %v1410 = vmax.f32 %v1362, %v1380
      %v1411 = vmax.f32 %v1363, %v1382
      %v1412 = vmax.f32 %v1364, %v1384
      %v1413 = vmax.f32 %v1365, %v1386
      %v1414 = vmax.f32 %v1366, %v1388
      %v1415 = vmax.f32 %v1367, %v1390
      %v1416 = vmax.f32 %v1368, %v1392
      %v1417 = vmax.f32 %v1369, %v1394
      %v1418 = vmax.f32 %v1370, %v1396
      %v1419 = vmax.f32 %v1371, %v1398
      %v1420 = vmax.f32 %v1372, %v1400
      %v1421 = vmax.f32 %v1373, %v1402
      %v1422 = vmax.f32 %v1374, %v1404
      %v1423 = vmax.f32 %v1375, %v1406
      %v1424 = vmax.f32 %v1376, %v1408
      %v1425 = vsub.f32 %v1361, %v1409
      %v1426 = vsub.f32 %v1362, %v1410
      %v1427 = vsub.f32 %v1363, %v1411
      %v1428 = vsub.f32 %v1364, %v1412
      %v1429 = vsub.f32 %v1365, %v1413
      %v1430 = vsub.f32 %v1366, %v1414
      %v1431 = vsub.f32 %v1367, %v1415
      %v1432 = vsub.f32 %v1368, %v1416
      %v1433 = vsub.f32 %v1369, %v1417
      %v1434 = vsub.f32 %v1370, %v1418
      %v1435 = vsub.f32 %v1371, %v1419
      %v1436 = vsub.f32 %v1372, %v1420
      %v1437 = vsub.f32 %v1373, %v1421
      %v1438 = vsub.f32 %v1374, %v1422
      %v1439 = vsub.f32 %v1375, %v1423
      %v1440 = vsub.f32 %v1376, %v1424
      %v1441 = vmul.f32 %v1425, 1.442695
      %v1442 = vpow.pop %v1441
      %v1443 = vmul.f32 %v1426, 1.442695
      %v1444 = vpow.pop %v1443
      %v1445 = vmul.f32 %v1427, 1.442695
      %v1446 = vpow.pop %v1445
      %v1447 = vmul.f32 %v1428, 1.442695
      %v1448 = vpow.pop %v1447
      %v1449 = vmul.f32 %v1429, 1.442695
      %v1450 = vpow.pop %v1449
      %v1451 = vmul.f32 %v1430, 1.442695
      %v1452 = vpow.pop %v1451
      %v1453 = vmul.f32 %v1431, 1.442695
      %v1454 = vpow.pop %v1453
      %v1455 = vmul.f32 %v1432, 1.442695
      %v1456 = vpow.pop %v1455
      %v1457 = vmul.f32 %v1433, 1.442695
      %v1458 = vpow.pop %v1457
      %v1459 = vmul.f32 %v1434, 1.442695
      %v1460 = vpow.pop %v1459
      %v1461 = vmul.f32 %v1435, 1.442695
      %v1462 = vpow.pop %v1461
      %v1463 = vmul.f32 %v1436, 1.442695
      %v1464 = vpow.pop %v1463
      %v1465 = vmul.f32 %v1437, 1.442695
      %v1466 = vpow.pop %v1465
      %v1467 = vmul.f32 %v1438, 1.442695
      %v1468 = vpow.pop %v1467
      %v1469 = vmul.f32 %v1439, 1.442695
      %v1470 = vpow.pop %v1469
      %v1471 = vmul.f32 %v1440, 1.442695
      %v1472 = vpow.pop %v1471
      %1474 = vset.pattern.permute.xlu0 0
      %1475 = vperm.xlu0 %1474, %v1409
      %v1476 = vpop.permute.xlu0 %1475
      %1479 = vset.pattern.permute.xlu0 0
      %1480 = vperm.xlu0 %1479, %v1410
      %v1481 = vpop.permute.xlu0 %1480
      %1484 = vset.pattern.permute.xlu0 0
      %1485 = vperm.xlu0 %1484, %v1411
      %v1486 = vpop.permute.xlu0 %1485
      %1489 = vset.pattern.permute.xlu0 0
      %1490 = vperm.xlu0 %1489, %v1412
      %v1491 = vpop.permute.xlu0 %1490
      %1494 = vset.pattern.permute.xlu0 0
      %1495 = vperm.xlu0 %1494, %v1413
      %v1496 = vpop.permute.xlu0 %1495
      %1499 = vset.pattern.permute.xlu0 0
      %1500 = vperm.xlu0 %1499, %v1414
      %v1501 = vpop.permute.xlu0 %1500
      %1504 = vset.pattern.permute.xlu0 0
      %1505 = vperm.xlu0 %1504, %v1415
      %v1506 = vpop.permute.xlu0 %1505
      %1509 = vset.pattern.permute.xlu0 0
      %1510 = vperm.xlu0 %1509, %v1416
      %v1511 = vpop.permute.xlu0 %1510
      %1514 = vset.pattern.permute.xlu0 0
      %1515 = vperm.xlu0 %1514, %v1417
      %v1516 = vpop.permute.xlu0 %1515
      %1519 = vset.pattern.permute.xlu0 0
      %1520 = vperm.xlu0 %1519, %v1418
      %v1521 = vpop.permute.xlu0 %1520
      %1524 = vset.pattern.permute.xlu0 0
      %1525 = vperm.xlu0 %1524, %v1419
      %v1526 = vpop.permute.xlu0 %1525
      %1529 = vset.pattern.permute.xlu0 0
      %1530 = vperm.xlu0 %1529, %v1420
      %v1531 = vpop.permute.xlu0 %1530
      %1534 = vset.pattern.permute.xlu0 0
      %1535 = vperm.xlu0 %1534, %v1421
      %v1536 = vpop.permute.xlu0 %1535
      %1539 = vset.pattern.permute.xlu0 0
      %1540 = vperm.xlu0 %1539, %v1422
      %v1541 = vpop.permute.xlu0 %1540
      %1544 = vset.pattern.permute.xlu0 0
      %1545 = vperm.xlu0 %1544, %v1423
      %v1546 = vpop.permute.xlu0 %1545
      %1549 = vset.pattern.permute.xlu0 0
      %1550 = vperm.xlu0 %1549, %v1424
      %v1551 = vpop.permute.xlu0 %1550
      %v1553 = vsub.f32 %v1299, %v1476
      %v1554 = vsub.f32 %v1302, %v1481
      %v1555 = vsub.f32 %v1307, %v1486
      %v1556 = vsub.f32 %v1310, %v1491
      %v1557 = vsub.f32 %v1315, %v1496
      %v1558 = vsub.f32 %v1318, %v1501
      %v1559 = vsub.f32 %v1323, %v1506
      %v1560 = vsub.f32 %v1326, %v1511
      %v1561 = vsub.f32 %v1331, %v1516
      %v1562 = vsub.f32 %v1334, %v1521
      %v1563 = vsub.f32 %v1339, %v1526
      %v1564 = vsub.f32 %v1342, %v1531
      %v1565 = vsub.f32 %v1347, %v1536
      %v1566 = vsub.f32 %v1350, %v1541
      %v1567 = vsub.f32 %v1355, %v1546
      %v1568 = vsub.f32 %v1358, %v1551
      %v1569 = vmul.f32 %v1553, 1.442695
      %v1570 = vpow.pop %v1569
      %v1571 = vmul.f32 %v1554, 1.442695
      %v1572 = vpow.pop %v1571
      %v1573 = vmul.f32 %v1555, 1.442695
      %v1574 = vpow.pop %v1573
      %v1575 = vmul.f32 %v1556, 1.442695
      %v1576 = vpow.pop %v1575
      %v1577 = vmul.f32 %v1557, 1.442695
      %v1578 = vpow.pop %v1577
      %v1579 = vmul.f32 %v1558, 1.442695
      %v1580 = vpow.pop %v1579
      %v1581 = vmul.f32 %v1559, 1.442695
      %v1582 = vpow.pop %v1581
      %v1583 = vmul.f32 %v1560, 1.442695
      %v1584 = vpow.pop %v1583
      %v1585 = vmul.f32 %v1561, 1.442695
      %v1586 = vpow.pop %v1585
      %v1587 = vmul.f32 %v1562, 1.442695
      %v1588 = vpow.pop %v1587
      %v1589 = vmul.f32 %v1563, 1.442695
      %v1590 = vpow.pop %v1589
      %v1591 = vmul.f32 %v1564, 1.442695
      %v1592 = vpow.pop %v1591
      %v1593 = vmul.f32 %v1565, 1.442695
      %v1594 = vpow.pop %v1593
      %v1595 = vmul.f32 %v1566, 1.442695
      %v1596 = vpow.pop %v1595
      %v1597 = vmul.f32 %v1567, 1.442695
      %v1598 = vpow.pop %v1597
      %v1599 = vmul.f32 %v1568, 1.442695
      %v1600 = vpow.pop %v1599
      %v1601 = vld [vmem:[#allocation5] sm:$0xff]
      %v1602 = vld [vmem:[#allocation5 + $0x8] sm:$0xff]
      %v1603 = vld [vmem:[#allocation5 + $0x10] sm:$0xff]
      %v1604 = vld [vmem:[#allocation5 + $0x18] sm:$0xff]
      %v1605 = vld [vmem:[#allocation5 + $0x20] sm:$0xff]
      %v1606 = vld [vmem:[#allocation5 + $0x28] sm:$0xff]
      %v1607 = vld [vmem:[#allocation5 + $0x30] sm:$0xff]
      %v1608 = vld [vmem:[#allocation5 + $0x38] sm:$0xff]
      %v1609 = vld [vmem:[#allocation5 + $0x40] sm:$0xff]
      %v1610 = vld [vmem:[#allocation5 + $0x48] sm:$0xff]
      %v1611 = vld [vmem:[#allocation5 + $0x50] sm:$0xff]
      %v1612 = vld [vmem:[#allocation5 + $0x58] sm:$0xff]
      %v1613 = vld [vmem:[#allocation5 + $0x60] sm:$0xff]
      %v1614 = vld [vmem:[#allocation5 + $0x68] sm:$0xff]
      %v1615 = vld [vmem:[#allocation5 + $0x70] sm:$0xff]
      %v1616 = vld [vmem:[#allocation5 + $0x78] sm:$0xff]
      %v1617 = vmul.f32 %v1442, %v1601
      %v1618 = vmul.f32 %v1444, %v1602
      %v1619 = vmul.f32 %v1446, %v1603
      %v1620 = vmul.f32 %v1448, %v1604
      %v1621 = vmul.f32 %v1450, %v1605
      %v1622 = vmul.f32 %v1452, %v1606
      %v1623 = vmul.f32 %v1454, %v1607
      %v1624 = vmul.f32 %v1456, %v1608
      %v1625 = vmul.f32 %v1458, %v1609
      %v1626 = vmul.f32 %v1460, %v1610
      %v1627 = vmul.f32 %v1462, %v1611
      %v1628 = vmul.f32 %v1464, %v1612
      %v1629 = vmul.f32 %v1466, %v1613
      %v1630 = vmul.f32 %v1468, %v1614
      %v1631 = vmul.f32 %v1470, %v1615
      %v1632 = vmul.f32 %v1472, %v1616
      %1633 = vadd.xlane.f32.xlu0 %v1570
      %v1634 = vpop.xlane.xlu0 %1633
      %1635 = vadd.xlane.f32.xlu0 %v1572
      %v1636 = vpop.xlane.xlu0 %1635
      %1637 = vadd.xlane.f32.xlu0 %v1574
      %v1638 = vpop.xlane.xlu0 %1637
      %1639 = vadd.xlane.f32.xlu0 %v1576
      %v1640 = vpop.xlane.xlu0 %1639
      %1641 = vadd.xlane.f32.xlu0 %v1578
      %v1642 = vpop.xlane.xlu0 %1641
      %1643 = vadd.xlane.f32.xlu0 %v1580
      %v1644 = vpop.xlane.xlu0 %1643
      %1645 = vadd.xlane.f32.xlu0 %v1582
      %v1646 = vpop.xlane.xlu0 %1645
      %1647 = vadd.xlane.f32.xlu0 %v1584
      %v1648 = vpop.xlane.xlu0 %1647
      %1649 = vadd.xlane.f32.xlu0 %v1586
      %v1650 = vpop.xlane.xlu0 %1649
      %1651 = vadd.xlane.f32.xlu0 %v1588
      %v1652 = vpop.xlane.xlu0 %1651
      %1653 = vadd.xlane.f32.xlu0 %v1590
      %v1654 = vpop.xlane.xlu0 %1653
      %1655 = vadd.xlane.f32.xlu0 %v1592
      %v1656 = vpop.xlane.xlu0 %1655
      %1657 = vadd.xlane.f32.xlu0 %v1594
      %v1658 = vpop.xlane.xlu0 %1657
      %1659 = vadd.xlane.f32.xlu0 %v1596
      %v1660 = vpop.xlane.xlu0 %1659
      %1661 = vadd.xlane.f32.xlu0 %v1598
      %v1662 = vpop.xlane.xlu0 %1661
      %1663 = vadd.xlane.f32.xlu0 %v1600
      %v1664 = vpop.xlane.xlu0 %1663
      %v1665 = vadd.f32 %v1617, %v1634
      %v1666 = vadd.f32 %v1618, %v1636
      %v1667 = vadd.f32 %v1619, %v1638
      %v1668 = vadd.f32 %v1620, %v1640
      %v1669 = vadd.f32 %v1621, %v1642
      %v1670 = vadd.f32 %v1622, %v1644
      %v1671 = vadd.f32 %v1623, %v1646
      %v1672 = vadd.f32 %v1624, %v1648
      %v1673 = vadd.f32 %v1625, %v1650
      %v1674 = vadd.f32 %v1626, %v1652
      %v1675 = vadd.f32 %v1627, %v1654
      %v1676 = vadd.f32 %v1628, %v1656
      %v1677 = vadd.f32 %v1629, %v1658
      %v1678 = vadd.f32 %v1630, %v1660
      %v1679 = vadd.f32 %v1631, %v1662
      %v1680 = vadd.f32 %v1632, %v1664
      %vm1681 = vcmask 7168
      %1682 = vst.msk [vmem:[#allocation5] sm:$0xff] %vm1681, %v1665
      %1683 = vst.msk [vmem:[#allocation5 + $0x8] sm:$0xff] %vm1681, %v1666
      %1684 = vst.msk [vmem:[#allocation5 + $0x10] sm:$0xff] %vm1681, %v1667
      %1685 = vst.msk [vmem:[#allocation5 + $0x18] sm:$0xff] %vm1681, %v1668
      %1686 = vst.msk [vmem:[#allocation5 + $0x20] sm:$0xff] %vm1681, %v1669
      %1687 = vst.msk [vmem:[#allocation5 + $0x28] sm:$0xff] %vm1681, %v1670
      %1688 = vst.msk [vmem:[#allocation5 + $0x30] sm:$0xff] %vm1681, %v1671
      %1689 = vst.msk [vmem:[#allocation5 + $0x38] sm:$0xff] %vm1681, %v1672
      %1690 = vst.msk [vmem:[#allocation5 + $0x40] sm:$0xff] %vm1681, %v1673
      %1691 = vst.msk [vmem:[#allocation5 + $0x48] sm:$0xff] %vm1681, %v1674
      %1692 = vst.msk [vmem:[#allocation5 + $0x50] sm:$0xff] %vm1681, %v1675
      %1693 = vst.msk [vmem:[#allocation5 + $0x58] sm:$0xff] %vm1681, %v1676
      %1694 = vst.msk [vmem:[#allocation5 + $0x60] sm:$0xff] %vm1681, %v1677
      %1695 = vst.msk [vmem:[#allocation5 + $0x68] sm:$0xff] %vm1681, %v1678
      %1696 = vst.msk [vmem:[#allocation5 + $0x70] sm:$0xff] %vm1681, %v1679
      %1697 = vst.msk [vmem:[#allocation5 + $0x78] sm:$0xff] %vm1681, %v1680
      %v1698 = vld [vmem:[#allocation3] sm:$0xff]
      %v1699 = vld [vmem:[#allocation3 + $0x8] sm:$0xff]
      %v1700 = vld [vmem:[#allocation3 + $0x10] sm:$0xff]
      %v1701 = vld [vmem:[#allocation3 + $0x18] sm:$0xff]
      %v1702 = vld [vmem:[#allocation3 + $0x20] sm:$0xff]
      %v1703 = vld [vmem:[#allocation3 + $0x28] sm:$0xff]
      %v1704 = vld [vmem:[#allocation3 + $0x30] sm:$0xff]
      %v1705 = vld [vmem:[#allocation3 + $0x38] sm:$0xff]
      %v1706 = vld [vmem:[#allocation3 + $0x40] sm:$0xff]
      %v1707 = vld [vmem:[#allocation3 + $0x48] sm:$0xff]
      %v1708 = vld [vmem:[#allocation3 + $0x50] sm:$0xff]
      %v1709 = vld [vmem:[#allocation3 + $0x58] sm:$0xff]
      %v1710 = vld [vmem:[#allocation3 + $0x60] sm:$0xff]
      %v1711 = vld [vmem:[#allocation3 + $0x68] sm:$0xff]
      %v1712 = vld [vmem:[#allocation3 + $0x70] sm:$0xff]
      %v1713 = vld [vmem:[#allocation3 + $0x78] sm:$0xff]
      %1715 = vset.pattern.permute.xlu0 0
      %1716 = vperm.xlu0 %1715, %v1442
      %v1717 = vpop.permute.xlu0 %1716
      %1720 = vset.pattern.permute.xlu0 0
      %1721 = vperm.xlu0 %1720, %v1444
      %v1722 = vpop.permute.xlu0 %1721
      %1725 = vset.pattern.permute.xlu0 0
      %1726 = vperm.xlu0 %1725, %v1446
      %v1727 = vpop.permute.xlu0 %1726
      %1730 = vset.pattern.permute.xlu0 0
      %1731 = vperm.xlu0 %1730, %v1448
      %v1732 = vpop.permute.xlu0 %1731
      %1735 = vset.pattern.permute.xlu0 0
      %1736 = vperm.xlu0 %1735, %v1450
      %v1737 = vpop.permute.xlu0 %1736
      %1740 = vset.pattern.permute.xlu0 0
      %1741 = vperm.xlu0 %1740, %v1452
      %v1742 = vpop.permute.xlu0 %1741
      %1745 = vset.pattern.permute.xlu0 0
      %1746 = vperm.xlu0 %1745, %v1454
      %v1747 = vpop.permute.xlu0 %1746
      %1750 = vset.pattern.permute.xlu0 0
      %1751 = vperm.xlu0 %1750, %v1456
      %v1752 = vpop.permute.xlu0 %1751
      %1755 = vset.pattern.permute.xlu0 0
      %1756 = vperm.xlu0 %1755, %v1458
      %v1757 = vpop.permute.xlu0 %1756
      %1760 = vset.pattern.permute.xlu0 0
      %1761 = vperm.xlu0 %1760, %v1460
      %v1762 = vpop.permute.xlu0 %1761
      %1765 = vset.pattern.permute.xlu0 0
      %1766 = vperm.xlu0 %1765, %v1462
      %v1767 = vpop.permute.xlu0 %1766
      %1770 = vset.pattern.permute.xlu0 0
      %1771 = vperm.xlu0 %1770, %v1464
      %v1772 = vpop.permute.xlu0 %1771
      %1775 = vset.pattern.permute.xlu0 0
      %1776 = vperm.xlu0 %1775, %v1466
      %v1777 = vpop.permute.xlu0 %1776
      %1780 = vset.pattern.permute.xlu0 0
      %1781 = vperm.xlu0 %1780, %v1468
      %v1782 = vpop.permute.xlu0 %1781
      %1785 = vset.pattern.permute.xlu0 0
      %1786 = vperm.xlu0 %1785, %v1470
      %v1787 = vpop.permute.xlu0 %1786
      %1790 = vset.pattern.permute.xlu0 0
      %1791 = vperm.xlu0 %1790, %v1472
      %v1792 = vpop.permute.xlu0 %1791
      %v1794 = vmul.f32 %v1717, %v1698
      %v1795 = vmul.f32 %v1722, %v1699
      %v1796 = vmul.f32 %v1727, %v1700
      %v1797 = vmul.f32 %v1732, %v1701
      %v1798 = vmul.f32 %v1737, %v1702
      %v1799 = vmul.f32 %v1742, %v1703
      %v1800 = vmul.f32 %v1747, %v1704
      %v1801 = vmul.f32 %v1752, %v1705
      %v1802 = vmul.f32 %v1757, %v1706
      %v1803 = vmul.f32 %v1762, %v1707
      %v1804 = vmul.f32 %v1767, %v1708
      %v1805 = vmul.f32 %v1772, %v1709
      %v1806 = vmul.f32 %v1777, %v1710
      %v1807 = vmul.f32 %v1782, %v1711
      %v1808 = vmul.f32 %v1787, %v1712
      %v1809 = vmul.f32 %v1792, %v1713
      %v1810 = vpack.c.bf16 %v1572, %v1570
      %v1811 = vpack.c.bf16 %v1576, %v1574
      %v1812 = vpack.c.bf16 %v1580, %v1578
      %v1813 = vpack.c.bf16 %v1584, %v1582
      %v1814 = vpack.c.bf16 %v1588, %v1586
      %v1815 = vpack.c.bf16 %v1592, %v1590
      %v1816 = vpack.c.bf16 %v1596, %v1594
      %v1817 = vpack.c.bf16 %v1600, %v1598
      %1818 = vmatprep.subr.bf16.mxu0 0
      %1819 = vmatpush1.bf16.msra.mxu0 %v1200
      %1820 = vmatprep.subr.bf16.mxu0 0
      %1821 = vmatpush1.bf16.msra.mxu0 %v1201
      %1822 = vmatprep.subr.bf16.mxu0 0
      %1823 = vmatpush1.bf16.msra.mxu0 %v1202
      %1824 = vmatprep.subr.bf16.mxu0 0
      %1825 = vmatpush1.bf16.msra.mxu0 %v1203
      %1826 = vmatprep.subr.bf16.mxu0 0
      %1827 = vmatpush1.bf16.msra.mxu0 %v1204
      %1828 = vmatprep.subr.bf16.mxu0 0
      %1829 = vmatpush1.bf16.msra.mxu0 %v1205
      %1830 = vmatprep.subr.bf16.mxu0 0
      %1831 = vmatpush1.bf16.msra.mxu0 %v1206
      %1832 = vmatprep.subr.bf16.mxu0 0
      %1833 = vmatpush1.bf16.msra.mxu0 %v1207
      %1834 = vmatprep.subr.bf16.mxu0 0
      %1835 = vmatpush1.bf16.msra.mxu0 0
      %1836 = vmatprep.subr.bf16.mxu0 0
      %1837 = vmatpush1.bf16.msra.mxu0 0
      %1838 = vmatprep.subr.bf16.mxu0 0
      %1839 = vmatpush1.bf16.msra.mxu0 0
      %1840 = vmatprep.subr.bf16.mxu0 0
      %1841 = vmatpush1.bf16.msra.mxu0 0
      %1842 = vmatprep.subr.bf16.mxu0 0
      %1843 = vmatpush1.bf16.msra.mxu0 0
      %1844 = vmatprep.subr.bf16.mxu0 0
      %1845 = vmatpush1.bf16.msra.mxu0 0
      %1846 = vmatprep.subr.bf16.mxu0 0
      %1847 = vmatpush1.bf16.msra.mxu0 0
      %1848 = vmatprep.subr.bf16.mxu0 0
      %1849 = vmatpush1.bf16.msra.mxu0 0
      %1850 = vmatprep.mubr.bf16.mxu0 0
      %1851 = vmatmul.mubr.bf16.gmra.mrb[0].mxu0 %v1810
      %v1852 = vpop.f32.mrb[0].mxu0
      %v1853 = vadd.f32 0.0, %v1852
      %v1854 = vpop.f32.mrb[0].mxu0
      %v1855 = vpop.f32.mrb[0].mxu0
      %v1856 = vadd.f32 0.0, %v1855
      %v1857 = vpop.f32.mrb[0].mxu0
      %1858 = vmatprep.mubr.bf16.mxu0 0
      %1859 = vmatmul.mubr.bf16.gmra.mrb[0].mxu0 %v1811
      %v1860 = vpop.f32.mrb[0].mxu0
      %v1861 = vadd.f32 0.0, %v1860
      %v1862 = vpop.f32.mrb[0].mxu0
      %v1863 = vpop.f32.mrb[0].mxu0
      %v1864 = vadd.f32 0.0, %v1863
      %v1865 = vpop.f32.mrb[0].mxu0
      %1866 = vmatprep.mubr.bf16.mxu0 0
      %1867 = vmatmul.mubr.bf16.gmra.mrb[0].mxu0 %v1812
      %v1868 = vpop.f32.mrb[0].mxu0
      %v1869 = vadd.f32 0.0, %v1868
      %v1870 = vpop.f32.mrb[0].mxu0
      %v1871 = vpop.f32.mrb[0].mxu0
      %v1872 = vadd.f32 0.0, %v1871
      %v1873 = vpop.f32.mrb[0].mxu0
      %1874 = vmatprep.mubr.bf16.mxu0 0
      %1875 = vmatmul.mubr.bf16.gmra.mrb[0].mxu0 %v1813
      %v1876 = vpop.f32.mrb[0].mxu0
      %v1877 = vadd.f32 0.0, %v1876
      %v1878 = vpop.f32.mrb[0].mxu0
      %v1879 = vpop.f32.mrb[0].mxu0
      %v1880 = vadd.f32 0.0, %v1879
      %v1881 = vpop.f32.mrb[0].mxu0
      %1882 = vmatprep.mubr.bf16.mxu0 0
      %1883 = vmatmul.mubr.bf16.gmra.mrb[0].mxu0 %v1814
      %v1884 = vpop.f32.mrb[0].mxu0
      %v1885 = vadd.f32 0.0, %v1884
      %v1886 = vpop.f32.mrb[0].mxu0
      %v1887 = vpop.f32.mrb[0].mxu0
      %v1888 = vadd.f32 0.0, %v1887
      %v1889 = vpop.f32.mrb[0].mxu0
      %1890 = vmatprep.mubr.bf16.mxu0 0
      %1891 = vmatmul.mubr.bf16.gmra.mrb[0].mxu0 %v1815
      %v1892 = vpop.f32.mrb[0].mxu0
      %v1893 = vadd.f32 0.0, %v1892
      %v1894 = vpop.f32.mrb[0].mxu0
      %v1895 = vpop.f32.mrb[0].mxu0
      %v1896 = vadd.f32 0.0, %v1895
      %v1897 = vpop.f32.mrb[0].mxu0
      %1898 = vmatprep.mubr.bf16.mxu0 0
      %1899 = vmatmul.mubr.bf16.gmra.mrb[0].mxu0 %v1816
      %v1900 = vpop.f32.mrb[0].mxu0
      %v1901 = vadd.f32 0.0, %v1900
      %v1902 = vpop.f32.mrb[0].mxu0
      %v1903 = vpop.f32.mrb[0].mxu0
      %v1904 = vadd.f32 0.0, %v1903
      %v1905 = vpop.f32.mrb[0].mxu0
      %1906 = vmatprep.mubr.bf16.mxu0 0
      %1907 = vmatmul.mubr.bf16.gmra.mrb[0].mxu0 %v1817
      %v1908 = vpop.f32.mrb[0].mxu0
      %v1909 = vadd.f32 0.0, %v1908
      %v1910 = vpop.f32.mrb[0].mxu0
      %v1911 = vpop.f32.mrb[0].mxu0
      %v1912 = vadd.f32 0.0, %v1911
      %v1913 = vpop.f32.mrb[0].mxu0
      %1914 = vdwg.mxu0
      %v1915 = vadd.f32 %v1794, %v1853
      %v1916 = vadd.f32 %v1795, %v1856
      %v1917 = vadd.f32 %v1796, %v1861
      %v1918 = vadd.f32 %v1797, %v1864
      %v1919 = vadd.f32 %v1798, %v1869
      %v1920 = vadd.f32 %v1799, %v1872
      %v1921 = vadd.f32 %v1800, %v1877
      %v1922 = vadd.f32 %v1801, %v1880
      %v1923 = vadd.f32 %v1802, %v1885
      %v1924 = vadd.f32 %v1803, %v1888
      %v1925 = vadd.f32 %v1804, %v1893
      %v1926 = vadd.f32 %v1805, %v1896
      %v1927 = vadd.f32 %v1806, %v1901
      %v1928 = vadd.f32 %v1807, %v1904
      %v1929 = vadd.f32 %v1808, %v1909
      %v1930 = vadd.f32 %v1809, %v1912
      %1931 = vst.msk [vmem:[#allocation3] sm:$0xff] %vm934, %v1915
      %1932 = vst.msk [vmem:[#allocation3 + $0x8] sm:$0xff] %vm934, %v1916
      %1933 = vst.msk [vmem:[#allocation3 + $0x10] sm:$0xff] %vm934, %v1917
      %1934 = vst.msk [vmem:[#allocation3 + $0x18] sm:$0xff] %vm934, %v1918
      %1935 = vst.msk [vmem:[#allocation3 + $0x20] sm:$0xff] %vm934, %v1919
      %1936 = vst.msk [vmem:[#allocation3 + $0x28] sm:$0xff] %vm934, %v1920
      %1937 = vst.msk [vmem:[#allocation3 + $0x30] sm:$0xff] %vm934, %v1921
      %1938 = vst.msk [vmem:[#allocation3 + $0x38] sm:$0xff] %vm934, %v1922
      %1939 = vst.msk [vmem:[#allocation3 + $0x40] sm:$0xff] %vm934, %v1923
      %1940 = vst.msk [vmem:[#allocation3 + $0x48] sm:$0xff] %vm934, %v1924
      %1941 = vst.msk [vmem:[#allocation3 + $0x50] sm:$0xff] %vm934, %v1925
      %1942 = vst.msk [vmem:[#allocation3 + $0x58] sm:$0xff] %vm934, %v1926
      %1943 = vst.msk [vmem:[#allocation3 + $0x60] sm:$0xff] %vm934, %v1927
      %1944 = vst.msk [vmem:[#allocation3 + $0x68] sm:$0xff] %vm934, %v1928
      %1945 = vst.msk [vmem:[#allocation3 + $0x70] sm:$0xff] %vm934, %v1929
      %1946 = vst.msk [vmem:[#allocation3 + $0x78] sm:$0xff] %vm934, %v1930
      %1947 = vst.msk [vmem:[#allocation4] sm:$0xff] %vm1681, %v1409
      %1948 = vst.msk [vmem:[#allocation4 + $0x8] sm:$0xff] %vm1681, %v1410
      %1949 = vst.msk [vmem:[#allocation4 + $0x10] sm:$0xff] %vm1681, %v1411
      %1950 = vst.msk [vmem:[#allocation4 + $0x18] sm:$0xff] %vm1681, %v1412
      %1951 = vst.msk [vmem:[#allocation4 + $0x20] sm:$0xff] %vm1681, %v1413
      %1952 = vst.msk [vmem:[#allocation4 + $0x28] sm:$0xff] %vm1681, %v1414
      %1953 = vst.msk [vmem:[#allocation4 + $0x30] sm:$0xff] %vm1681, %v1415
      %1954 = vst.msk [vmem:[#allocation4 + $0x38] sm:$0xff] %vm1681, %v1416
      %1955 = vst.msk [vmem:[#allocation4 + $0x40] sm:$0xff] %vm1681, %v1417
      %1956 = vst.msk [vmem:[#allocation4 + $0x48] sm:$0xff] %vm1681, %v1418
      %1957 = vst.msk [vmem:[#allocation4 + $0x50] sm:$0xff] %vm1681, %v1419
      %1958 = vst.msk [vmem:[#allocation4 + $0x58] sm:$0xff] %vm1681, %v1420
      %1959 = vst.msk [vmem:[#allocation4 + $0x60] sm:$0xff] %vm1681, %v1421
      %1960 = vst.msk [vmem:[#allocation4 + $0x68] sm:$0xff] %vm1681, %v1422
      %1961 = vst.msk [vmem:[#allocation4 + $0x70] sm:$0xff] %vm1681, %v1423
      %1962 = vst.msk [vmem:[#allocation4 + $0x78] sm:$0xff] %vm1681, %v1424
      %p1963 = scmp.eq.s32.totalorder %s30, 1
      // Predicated region
      $region73: #{tpu_custom_call.1} parent=67 // pred_check
        %p1964 = pneg %p1963
      $region74: #{tpu_custom_call.1} parent=67 // pred_check_branch
        %1966 = sbr.rel (%p1964) target = $region76
      $region75: #{tpu_custom_call.1} parent=67 // pred_region
        %v1967 = vld [vmem:[#allocation3] sm:$0xff]
        %v1968 = vld [vmem:[#allocation3 + $0x8] sm:$0xff]
        %v1969 = vld [vmem:[#allocation3 + $0x10] sm:$0xff]
        %v1970 = vld [vmem:[#allocation3 + $0x18] sm:$0xff]
        %v1971 = vld [vmem:[#allocation3 + $0x20] sm:$0xff]
        %v1972 = vld [vmem:[#allocation3 + $0x28] sm:$0xff]
        %v1973 = vld [vmem:[#allocation3 + $0x30] sm:$0xff]
        %v1974 = vld [vmem:[#allocation3 + $0x38] sm:$0xff]
        %v1975 = vld [vmem:[#allocation3 + $0x40] sm:$0xff]
        %v1976 = vld [vmem:[#allocation3 + $0x48] sm:$0xff]
        %v1977 = vld [vmem:[#allocation3 + $0x50] sm:$0xff]
        %v1978 = vld [vmem:[#allocation3 + $0x58] sm:$0xff]
        %v1979 = vld [vmem:[#allocation3 + $0x60] sm:$0xff]
        %v1980 = vld [vmem:[#allocation3 + $0x68] sm:$0xff]
        %v1981 = vld [vmem:[#allocation3 + $0x70] sm:$0xff]
        %v1982 = vld [vmem:[#allocation3 + $0x78] sm:$0xff]
        %v1983 = vld [vmem:[#allocation5] sm:$0xff]
        %v1984 = vld [vmem:[#allocation5 + $0x8] sm:$0xff]
        %v1985 = vld [vmem:[#allocation5 + $0x10] sm:$0xff]
        %v1986 = vld [vmem:[#allocation5 + $0x18] sm:$0xff]
        %v1987 = vld [vmem:[#allocation5 + $0x20] sm:$0xff]
        %v1988 = vld [vmem:[#allocation5 + $0x28] sm:$0xff]
        %v1989 = vld [vmem:[#allocation5 + $0x30] sm:$0xff]
        %v1990 = vld [vmem:[#allocation5 + $0x38] sm:$0xff]
        %v1991 = vld [vmem:[#allocation5 + $0x40] sm:$0xff]
        %v1992 = vld [vmem:[#allocation5 + $0x48] sm:$0xff]
        %v1993 = vld [vmem:[#allocation5 + $0x50] sm:$0xff]
        %v1994 = vld [vmem:[#allocation5 + $0x58] sm:$0xff]
        %v1995 = vld [vmem:[#allocation5 + $0x60] sm:$0xff]
        %v1996 = vld [vmem:[#allocation5 + $0x68] sm:$0xff]
        %v1997 = vld [vmem:[#allocation5 + $0x70] sm:$0xff]
        %v1998 = vld [vmem:[#allocation5 + $0x78] sm:$0xff]
        %v1999 = vrcp.pop %v1983
        %v2000 = vrcp.pop %v1984
        %v2001 = vrcp.pop %v1985
        %v2002 = vrcp.pop %v1986
        %v2003 = vrcp.pop %v1987
        %v2004 = vrcp.pop %v1988
        %v2005 = vrcp.pop %v1989
        %v2006 = vrcp.pop %v1990
        %v2007 = vrcp.pop %v1991
        %v2008 = vrcp.pop %v1992
        %v2009 = vrcp.pop %v1993
        %v2010 = vrcp.pop %v1994
        %v2011 = vrcp.pop %v1995
        %v2012 = vrcp.pop %v1996
        %v2013 = vrcp.pop %v1997
        %v2014 = vrcp.pop %v1998
        %2016 = vset.pattern.permute.xlu0 0
        %2017 = vperm.xlu0 %2016, %v1999
        %v2018 = vpop.permute.xlu0 %2017
        %2021 = vset.pattern.permute.xlu0 0
        %2022 = vperm.xlu0 %2021, %v2000
        %v2023 = vpop.permute.xlu0 %2022
        %2026 = vset.pattern.permute.xlu0 0
        %2027 = vperm.xlu0 %2026, %v2001
        %v2028 = vpop.permute.xlu0 %2027
        %2031 = vset.pattern.permute.xlu0 0
        %2032 = vperm.xlu0 %2031, %v2002
        %v2033 = vpop.permute.xlu0 %2032
        %2036 = vset.pattern.permute.xlu0 0
        %2037 = vperm.xlu0 %2036, %v2003
        %v2038 = vpop.permute.xlu0 %2037
        %2041 = vset.pattern.permute.xlu0 0
        %2042 = vperm.xlu0 %2041, %v2004
        %v2043 = vpop.permute.xlu0 %2042
        %2046 = vset.pattern.permute.xlu0 0
        %2047 = vperm.xlu0 %2046, %v2005
        %v2048 = vpop.permute.xlu0 %2047
        %2051 = vset.pattern.permute.xlu0 0
        %2052 = vperm.xlu0 %2051, %v2006
        %v2053 = vpop.permute.xlu0 %2052
        %2056 = vset.pattern.permute.xlu0 0
        %2057 = vperm.xlu0 %2056, %v2007
        %v2058 = vpop.permute.xlu0 %2057
        %2061 = vset.pattern.permute.xlu0 0
        %2062 = vperm.xlu0 %2061, %v2008
        %v2063 = vpop.permute.xlu0 %2062
        %2066 = vset.pattern.permute.xlu0 0
        %2067 = vperm.xlu0 %2066, %v2009
        %v2068 = vpop.permute.xlu0 %2067
        %2071 = vset.pattern.permute.xlu0 0
        %2072 = vperm.xlu0 %2071, %v2010
        %v2073 = vpop.permute.xlu0 %2072
        %2076 = vset.pattern.permute.xlu0 0
        %2077 = vperm.xlu0 %2076, %v2011
        %v2078 = vpop.permute.xlu0 %2077
        %2081 = vset.pattern.permute.xlu0 0
        %2082 = vperm.xlu0 %2081, %v2012
        %v2083 = vpop.permute.xlu0 %2082
        %2086 = vset.pattern.permute.xlu0 0
        %2087 = vperm.xlu0 %2086, %v2013
        %v2088 = vpop.permute.xlu0 %2087
        %2091 = vset.pattern.permute.xlu0 0
        %2092 = vperm.xlu0 %2091, %v2014
        %v2093 = vpop.permute.xlu0 %2092
        %v2095 = vmul.f32 %v1967, %v2018
        %v2096 = vmul.f32 %v1968, %v2023
        %v2097 = vmul.f32 %v1969, %v2028
        %v2098 = vmul.f32 %v1970, %v2033
        %v2099 = vmul.f32 %v1971, %v2038
        %v2100 = vmul.f32 %v1972, %v2043
        %v2101 = vmul.f32 %v1973, %v2048
        %v2102 = vmul.f32 %v1974, %v2053
        %v2103 = vmul.f32 %v1975, %v2058
        %v2104 = vmul.f32 %v1976, %v2063
        %v2105 = vmul.f32 %v1977, %v2068
        %v2106 = vmul.f32 %v1978, %v2073
        %v2107 = vmul.f32 %v1979, %v2078
        %v2108 = vmul.f32 %v1980, %v2083
        %v2109 = vmul.f32 %v1981, %v2088
        %v2110 = vmul.f32 %v1982, %v2093
        %v2111 = vpack.c.bf16 %v2096, %v2095
        %v2112 = vpack.c.bf16 %v2098, %v2097
        %v2113 = vpack.c.bf16 %v2100, %v2099
        %v2114 = vpack.c.bf16 %v2102, %v2101
        %v2115 = vpack.c.bf16 %v2104, %v2103
        %v2116 = vpack.c.bf16 %v2106, %v2105
        %v2117 = vpack.c.bf16 %v2108, %v2107
        %v2118 = vpack.c.bf16 %v2110, %v2109
        %v2119 = vld [vmem:[%s10] sm:$0xf]
        %v2120 = vld [vmem:[%s10 + $0x4] sm:$0xf]
        %v2121 = vld [vmem:[%s10 + $0x8] sm:$0xf]
        %v2122 = vld [vmem:[%s10 + $0xc] sm:$0xf]
        %v2123 = vld [vmem:[%s10 + $0x10] sm:$0xf]
        %v2124 = vld [vmem:[%s10 + $0x14] sm:$0xf]
        %v2125 = vld [vmem:[%s10 + $0x18] sm:$0xf]
        %v2126 = vld [vmem:[%s10 + $0x1c] sm:$0xf]
        %v2127 = vld [vmem:[%s11] sm:$0x1]
        %v2129 = vlaneseq
        %v2130 = vshrl.u32 %v2129, 7
        %v2131 = vsub.s32 0, %v2130
        %v2132 = vrot.slane %v2127, %v2131
        %v2142 = vunpack.c.l.b16 %v2119
        %v2143 = vunpack.c.l.b16 %v2120
        %v2144 = vunpack.c.l.b16 %v2121
        %v2145 = vunpack.c.l.b16 %v2122
        %v2146 = vunpack.c.l.b16 %v2123
        %v2147 = vunpack.c.l.b16 %v2124
        %v2148 = vunpack.c.l.b16 %v2125
        %v2149 = vunpack.c.l.b16 %v2126
        %v2150 = vpack.c.b16 %v2143, %v2142
        %v2151 = vpack.c.b16 %v2145, %v2144
        %v2152 = vpack.c.b16 %v2147, %v2146
        %v2153 = vpack.c.b16 %v2149, %v2148
        %v2159 = vsel %vm934, %v2111, 0
        %v2162 = vsel %vm934, %v2112, 0
        %v2165 = vsel %vm934, %v2113, 0
        %v2168 = vsel %vm934, %v2114, 0
        %v2171 = vsel %vm934, %v2115, 0
        %v2174 = vsel %vm934, %v2116, 0
        %v2177 = vsel %vm934, %v2117, 0
        %v2180 = vsel %vm934, %v2118, 0
        %2182 = vmatprep.subr.bf16.mxu0 0
        %2183 = vmatpush1.bf16.msra.mxu0 %v2150
        %2184 = vmatprep.subr.bf16.mxu0 0
        %2185 = vmatpush1.bf16.msra.mxu0 %v2151
        %2186 = vmatprep.subr.bf16.mxu0 0
        %2187 = vmatpush1.bf16.msra.mxu0 %v2152
        %2188 = vmatprep.subr.bf16.mxu0 0
        %2189 = vmatpush1.bf16.msra.mxu0 %v2153
        %2190 = vmatprep.subr.bf16.mxu0 0
        %2191 = vmatpush1.bf16.msra.mxu0 0
        %2192 = vmatprep.subr.bf16.mxu0 0
        %2193 = vmatpush1.bf16.msra.mxu0 0
        %2194 = vmatprep.subr.bf16.mxu0 0
        %2195 = vmatpush1.bf16.msra.mxu0 0
        %2196 = vmatprep.subr.bf16.mxu0 0
        %2197 = vmatpush1.bf16.msra.mxu0 0
        %2198 = vmatprep.subr.bf16.mxu0 0
        %2199 = vmatpush1.bf16.msra.mxu0 0
        %2200 = vmatprep.subr.bf16.mxu0 0
        %2201 = vmatpush1.bf16.msra.mxu0 0
        %2202 = vmatprep.subr.bf16.mxu0 0
        %2203 = vmatpush1.bf16.msra.mxu0 0
        %2204 = vmatprep.subr.bf16.mxu0 0
        %2205 = vmatpush1.bf16.msra.mxu0 0
        %2206 = vmatprep.subr.bf16.mxu0 0
        %2207 = vmatpush1.bf16.msra.mxu0 0
        %2208 = vmatprep.subr.bf16.mxu0 0
        %2209 = vmatpush1.bf16.msra.mxu0 0
        %2210 = vmatprep.subr.bf16.mxu0 0
        %2211 = vmatpush1.bf16.msra.mxu0 0
        %2212 = vmatprep.subr.bf16.mxu0 0
        %2213 = vmatpush1.bf16.msra.mxu0 0
        %2214 = vmatprep.mubr.bf16.mxu0 0
        %2215 = vmatmul.mubr.bf16.gmra.mrb[0].mxu0 %v2159
        %v2216 = vpop.f32.mrb[0].mxu0
        %v2217 = vadd.f32 %v2132, %v2216
        %v2218 = vpop.f32.mrb[0].mxu0
        %v2219 = vpop.f32.mrb[0].mxu0
        %v2220 = vadd.f32 %v2132, %v2219
        %v2221 = vpop.f32.mrb[0].mxu0
        %2222 = vmatprep.mubr.bf16.mxu0 0
        %2223 = vmatmul.mubr.bf16.gmra.mrb[0].mxu0 %v2162
        %v2224 = vpop.f32.mrb[0].mxu0
        %v2225 = vadd.f32 %v2132, %v2224
        %v2226 = vpop.f32.mrb[0].mxu0
        %v2227 = vpop.f32.mrb[0].mxu0
        %v2228 = vadd.f32 %v2132, %v2227
        %v2229 = vpop.f32.mrb[0].mxu0
        %2230 = vmatprep.mubr.bf16.mxu0 0
        %2231 = vmatmul.mubr.bf16.gmra.mrb[0].mxu0 %v2165
        %v2232 = vpop.f32.mrb[0].mxu0
        %v2233 = vadd.f32 %v2132, %v2232
        %v2234 = vpop.f32.mrb[0].mxu0
        %v2235 = vpop.f32.mrb[0].mxu0
        %v2236 = vadd.f32 %v2132, %v2235
        %v2237 = vpop.f32.mrb[0].mxu0
        %2238 = vmatprep.mubr.bf16.mxu0 0
        %2239 = vmatmul.mubr.bf16.gmra.mrb[0].mxu0 %v2168
        %v2240 = vpop.f32.mrb[0].mxu0
        %v2241 = vadd.f32 %v2132, %v2240
        %v2242 = vpop.f32.mrb[0].mxu0
        %v2243 = vpop.f32.mrb[0].mxu0
        %v2244 = vadd.f32 %v2132, %v2243
        %v2245 = vpop.f32.mrb[0].mxu0
        %2246 = vmatprep.mubr.bf16.mxu0 0
        %2247 = vmatmul.mubr.bf16.gmra.mrb[0].mxu0 %v2171
        %v2248 = vpop.f32.mrb[0].mxu0
        %v2249 = vadd.f32 %v2132, %v2248
        %v2250 = vpop.f32.mrb[0].mxu0
        %v2251 = vpop.f32.mrb[0].mxu0
        %v2252 = vadd.f32 %v2132, %v2251
        %v2253 = vpop.f32.mrb[0].mxu0
        %2254 = vmatprep.mubr.bf16.mxu0 0
        %2255 = vmatmul.mubr.bf16.gmra.mrb[0].mxu0 %v2174
        %v2256 = vpop.f32.mrb[0].mxu0
        %v2257 = vadd.f32 %v2132, %v2256
        %v2258 = vpop.f32.mrb[0].mxu0
        %v2259 = vpop.f32.mrb[0].mxu0
        %v2260 = vadd.f32 %v2132, %v2259
        %v2261 = vpop.f32.mrb[0].mxu0
        %2262 = vmatprep.mubr.bf16.mxu0 0
        %2263 = vmatmul.mubr.bf16.gmra.mrb[0].mxu0 %v2177
        %v2264 = vpop.f32.mrb[0].mxu0
        %v2265 = vadd.f32 %v2132, %v2264
        %v2266 = vpop.f32.mrb[0].mxu0
        %v2267 = vpop.f32.mrb[0].mxu0
        %v2268 = vadd.f32 %v2132, %v2267
        %v2269 = vpop.f32.mrb[0].mxu0
        %2270 = vmatprep.mubr.bf16.mxu0 0
        %2271 = vmatmul.mubr.bf16.gmra.mrb[0].mxu0 %v2180
        %v2272 = vpop.f32.mrb[0].mxu0
        %v2273 = vadd.f32 %v2132, %v2272
        %v2274 = vpop.f32.mrb[0].mxu0
        %v2275 = vpop.f32.mrb[0].mxu0
        %v2276 = vadd.f32 %v2132, %v2275
        %v2277 = vpop.f32.mrb[0].mxu0
        %2278 = vdwg.mxu0
        %v2279 = vld [vmem:[%s496] sm:$0xff]
        %v2280 = vld [vmem:[%s496 + $0x8] sm:$0xff]
        %v2281 = vld [vmem:[%s496 + $0x10] sm:$0xff]
        %v2282 = vld [vmem:[%s496 + $0x18] sm:$0xff]
        %v2283 = vld [vmem:[%s496 + $0x20] sm:$0xff]
        %v2284 = vld [vmem:[%s496 + $0x28] sm:$0xff]
        %v2285 = vld [vmem:[%s496 + $0x30] sm:$0xff]
        %v2286 = vld [vmem:[%s496 + $0x38] sm:$0xff]
        %v2287 = vld [vmem:[%s496 + $0x40] sm:$0xff]
        %v2288 = vld [vmem:[%s496 + $0x48] sm:$0xff]
        %v2289 = vld [vmem:[%s496 + $0x50] sm:$0xff]
        %v2290 = vld [vmem:[%s496 + $0x58] sm:$0xff]
        %v2291 = vld [vmem:[%s496 + $0x60] sm:$0xff]
        %v2292 = vld [vmem:[%s496 + $0x68] sm:$0xff]
        %v2293 = vld [vmem:[%s496 + $0x70] sm:$0xff]
        %v2294 = vld [vmem:[%s496 + $0x78] sm:$0xff]
        %v2295 = vadd.f32 %v2279, %v2217
        %v2296 = vadd.f32 %v2280, %v2220
        %v2297 = vadd.f32 %v2281, %v2225
        %v2298 = vadd.f32 %v2282, %v2228
        %v2299 = vadd.f32 %v2283, %v2233
        %v2300 = vadd.f32 %v2284, %v2236
        %v2301 = vadd.f32 %v2285, %v2241
        %v2302 = vadd.f32 %v2286, %v2244
        %v2303 = vadd.f32 %v2287, %v2249
        %v2304 = vadd.f32 %v2288, %v2252
        %v2305 = vadd.f32 %v2289, %v2257
        %v2306 = vadd.f32 %v2290, %v2260
        %v2307 = vadd.f32 %v2291, %v2265
        %v2308 = vadd.f32 %v2292, %v2268
        %v2309 = vadd.f32 %v2293, %v2273
        %v2310 = vadd.f32 %v2294, %v2276
        %2311 = vst.msk [vmem:[%s522] sm:$0xff] %vm934, %v2295
        %2312 = vst.msk [vmem:[%s522 + $0x8] sm:$0xff] %vm934, %v2296
        %2313 = vst.msk [vmem:[%s522 + $0x10] sm:$0xff] %vm934, %v2297
        %2314 = vst.msk [vmem:[%s522 + $0x18] sm:$0xff] %vm934, %v2298
        %2315 = vst.msk [vmem:[%s522 + $0x20] sm:$0xff] %vm934, %v2299
        %2316 = vst.msk [vmem:[%s522 + $0x28] sm:$0xff] %vm934, %v2300
        %2317 = vst.msk [vmem:[%s522 + $0x30] sm:$0xff] %vm934, %v2301
        %2318 = vst.msk [vmem:[%s522 + $0x38] sm:$0xff] %vm934, %v2302
        %2319 = vst.msk [vmem:[%s522 + $0x40] sm:$0xff] %vm934, %v2303
        %2320 = vst.msk [vmem:[%s522 + $0x48] sm:$0xff] %vm934, %v2304
        %2321 = vst.msk [vmem:[%s522 + $0x50] sm:$0xff] %vm934, %v2305
        %2322 = vst.msk [vmem:[%s522 + $0x58] sm:$0xff] %vm934, %v2306
        %2323 = vst.msk [vmem:[%s522 + $0x60] sm:$0xff] %vm934, %v2307
        %2324 = vst.msk [vmem:[%s522 + $0x68] sm:$0xff] %vm934, %v2308
        %2325 = vst.msk [vmem:[%s522 + $0x70] sm:$0xff] %vm934, %v2309
        %2326 = vst.msk [vmem:[%s522 + $0x78] sm:$0xff] %vm934, %v2310
      $region76: #{tpu_custom_call.1} parent=67 // pred_fallthru
        _
      %s2327 = smul.u32 16, %s29
      %p2328 = scmp.lt.s32.totalorder %s28, 1
      %s2329 = scalar_select %p2328, %s28, 1
      %p2330 = scmp.lt.s32.totalorder %s2327, 31
      %s2331 = scalar_select %p2330, %s2327, 31
      %s2332 = smul.addr %s2329, 32
      %s2333 = sadd.s32 %s2331, %s2332
      %s2334 = smul.addr %s2333, 8
      %s2335 = scalar_lea.vmem %s12, %s2334
      // Predicated region
      $region77: #{tpu_custom_call.1} parent=67 // pred_check
        %p2336 = pneg %p338
      $region78: #{tpu_custom_call.1} parent=67 // pred_check_branch
        %2338 = sbr.rel (%p2336) target = $region80
      $region79: #{tpu_custom_call.1} parent=67 // pred_region
        %s2339 = smul.u32 16, %s29
      $region80: #{tpu_custom_call.1} parent=67 // pred_fallthru
        _
    $region68: #{tpu_custom_call.1} parent=5 // pred_fallthru
      _
    %p2340 = scmp.le.s32.totalorder 2, %s18
    // Predicated region
    $region81: #{tpu_custom_call.1} parent=5 // pred_check
      %p2341 = pneg %p2340
    $region82: #{tpu_custom_call.1} parent=5 // pred_check_branch
      %2343 = sbr.rel (%p2341) target = $region84
    $region83: #{tpu_custom_call.1} parent=5 // pred_region
      %s2344 = ssub.s32 %s18, 2
      // Predicated region
      $region85: #{tpu_custom_call.1} parent=83 // pred_check
        %p2345 = pneg %p344
      $region86: #{tpu_custom_call.1} parent=83 // pred_check_branch
        %2347 = sbr.rel (%p2345) target = $region88
      $region87: #{tpu_custom_call.1} parent=83 // pred_region
        %s2348 = smul.u32 16, %s32
        %p2349 = scmp.lt.s32.totalorder %s31, 1
        %s2350 = scalar_select %p2349, %s31, 1
        %p2351 = scmp.lt.s32.totalorder %s2348, 31
        %s2352 = scalar_select %p2351, %s2348, 31
        %s2353 = smul.addr %s2350, 32
        %s2354 = sadd.s32 %s2352, %s2353
        %s2355 = smul.addr %s2354, 8
        %s2356 = scalar_lea.vmem %s12, %s2355
      $region88: #{tpu_custom_call.1} parent=83 // pred_fallthru
        _
    $region84: #{tpu_custom_call.1} parent=5 // pred_fallthru
      _
  $region6: #{tpu_custom_call.1} parent=0 // loop_footer
    %s22 = sadd.s32 1, %s18
  $region7: #{tpu_custom_call.1} parent=0 // loop_footer_branch
    %17 = sbr.rel target = $region3
  $region8: #{tpu_custom_call.1} parent=0 // loop_exit
    _

</llo_original>
